<compile_context>
chip_gen: v7x
topology: tpu7x:2x2x1
jax: 0.10.0
libtpu: 0.0.40
codegen_flags: <defaults>
</compile_context>

<pallas_src>
import math

import jax
import jax.numpy as jnp
from jax.experimental import pallas as pl
from jax.experimental.pallas import tpu as pltpu

# ---- model hyperparameters (small, consistent with the module) --------------
EMBEDDING_DIM = 1      # forced by x.unsqueeze(-1)
HIDDEN_SIZE = 32
N_LAYERS = 2
DROPOUT_PROB = 0.1     # eval mode -> identity
BATCH = 4
SEQ = 8
LN_EPS = 1e-5


def stock_regression_kernel(x_ref, p_ref, out_ref):
    # x_ref : (T*B, 1)   time-major flattened input, row t*B + b = x[b, t]
    # p_ref : (2H+24, 8H) packed parameter slab (see init_params for layout)
    # out   : (B, 128)   result broadcast across lanes (wrapper slices [:, :1])
    B = out_ref.shape[0]
    H = p_ref.shape[1] // 8
    T = x_ref.shape[0] // B

    # --- unpack the single param slab (static, aligned slices) ---------------
    w_fused = p_ref[0:2 * H, :]                        # (2H, 8H) = [[Whh0,Wih1],[0,Whh1]]
    wih0 = p_ref[2 * H:2 * H + 1, 0:4 * H]             # (1, 4H)
    b0 = p_ref[2 * H:2 * H + 1, 4 * H:8 * H]           # (1, 4H)  (b_ih0 + b_hh0)
    b1 = p_ref[2 * H + 8:2 * H + 9, 0:4 * H]           # (1, 4H)  (b_ih1 + b_hh1)
    wp = p_ref[2 * H + 8:2 * H + 9, 4 * H:5 * H]        # (1, H)   gamma * fc_weight
    bp = p_ref[2 * H + 16:2 * H + 17, 0:1]             # (1, 1)   beta.fc_w + fc_bias

    # --- layer-0 input projections: one slab, off the recurrent critical path -
    # embedding_dim == 1, so it is a single broadcast mul: (T*B,1)*(1,4H)+b0.
    gx0_all = x_ref[...] * wih0 + b0                   # (T*B, 4H)

    def half_cell(gates, c):
        # gate order in the 4H dim is [i | f | o | g] (permuted in the wrapper).
        # Full-vreg sigmoid/tanh (2 clean EUP pushes); slice gates afterwards.
        sig = jax.nn.sigmoid(gates)
        tg = jnp.tanh(gates)
        i_g = sig[:, 0 * H:1 * H]
        f_g = sig[:, 1 * H:2 * H]
        o_g = sig[:, 2 * H:3 * H]
        g_g = tg[:, 3 * H:4 * H]
        c_new = f_g * c + i_g * g_g
        h_new = o_g * jnp.tanh(c_new)
        return h_new, c_new

    # --- fused two-layer recurrence: layer 1 lags layer 0 by one step ---------
    # Going into combined step s the state is (h0_{s-1}, c0_{s-1}, h1_{s-2}, c1_{s-2}).
    h0 = jnp.zeros((B, H), jnp.float32)
    c0 = jnp.zeros((B, H), jnp.float32)
    h1 = jnp.zeros((B, H), jnp.float32)
    c1 = jnp.zeros((B, H), jnp.float32)

    for s in range(T + 1):                             # Python-unrolled on purpose
        if s == 0:
            # All recurrent states are zero -> no dot; only layer 0, t=0 runs.
            h0, c0 = half_cell(gx0_all[0:B, :], c0)
        else:
            lhs = jnp.concatenate([h0, h1], axis=1)    # (B, 2H)
            fused = jnp.dot(lhs, w_fused,
                            preferred_element_type=jnp.float32)   # (B, 8H)
            # layer 1, time t = s-1  (uses h0_{s-1} via Wih1 and h1_{s-2} via Whh1)
            h1, c1 = half_cell(fused[:, 4 * H:8 * H] + b1, c1)
            if s < T:
                # layer 0, time t = s
                h0, c0 = half_cell(fused[:, 0:4 * H]
                                   + gx0_all[s * B:(s + 1) * B, :], c0)

    h_last = h1                                        # (B, H) = h1_{T-1}

    # --- LayerNorm (biased variance, like torch) with affine folded into FC ---
    mean = jnp.mean(h_last, axis=-1, keepdims=True)
    centered = h_last - mean
    var = jnp.mean(centered * centered, axis=-1, keepdims=True)
    z = centered * jax.lax.rsqrt(var + LN_EPS)

    # Dropout: evaluation mode -> identity (nn.Dropout is a no-op in eval).
    # TODO(synk): training-mode dropout (pltpu.prng_seed/prng_random_bits) not emitted.

    # --- Final Linear(H,1) (LN affine pre-folded): VPU mul + lane reduce -------
    res = jnp.sum(z * wp, axis=-1, keepdims=True) + bp             # (B, 1)
    # lane-dense store: broadcast the scalar across 128 lanes, wrapper slices it.
    out_ref[...] = jnp.broadcast_to(res, out_ref.shape).astype(out_ref.dtype)


def init_params(key, hidden):
    """PyTorch-style uniform(-1/sqrt(H), 1/sqrt(H)) init, packed into ONE slab."""
    H = hidden
    bound = 1.0 / math.sqrt(H)
    ks = jax.random.split(key, 10)
    u = lambda k, shape: jax.random.uniform(k, shape, jnp.float32, -bound, bound)

    # PyTorch-layout LSTM params (gate row order i, f, g, o).
    wih0 = u(ks[0], (4 * H, EMBEDDING_DIM))            # (4H, 1)
    whh0 = u(ks[1], (4 * H, H))
    b0 = u(ks[2], (4 * H,)) + u(ks[3], (4 * H,))        # b_ih + b_hh
    wih1 = u(ks[4], (4 * H, H))
    whh1 = u(ks[5], (4 * H, H))
    b1 = u(ks[6], (4 * H,)) + u(ks[7], (4 * H,))
    gamma = jnp.ones((H,), jnp.float32)
    beta = jnp.zeros((H,), jnp.float32)
    fcw = jax.random.uniform(ks[8], (1, H), jnp.float32, -bound, bound)
    fcb = jax.random.uniform(ks[9], (1,), jnp.float32, -bound, bound)

    # Gate reorder (i, f, g, o) -> (i, f, o, g), applied consistently to every
    # weight_ih / weight_hh / bias so the kernel can fuse the nonlinearities.
    perm = jnp.concatenate([jnp.arange(0, H), jnp.arange(H, 2 * H),
                            jnp.arange(3 * H, 4 * H), jnp.arange(2 * H, 3 * H)])
    wih0, whh0, b0 = wih0[perm], whh0[perm], b0[perm]
    wih1, whh1, b1 = wih1[perm], whh1[perm], b1[perm]

    # Pre-transpose to (in_features, 4H) for row-major MXU dots.
    wih0_t, whh0_t = wih0.T, whh0.T                    # (1, 4H), (H, 4H)
    wih1_t, whh1_t = wih1.T, whh1.T                    # (H, 4H), (H, 4H)

    # Fused recurrent RHS  [[Whh0 | Wih1], [0 | Whh1]]  ->  (2H, 8H) = (64, 256).
    w_fused = jnp.zeros((2 * H, 8 * H), jnp.float32)
    w_fused = w_fused.at[0:H, 0:4 * H].set(whh0_t)
    w_fused = w_fused.at[0:H, 4 * H:8 * H].set(wih1_t)
    w_fused = w_fused.at[H:2 * H, 4 * H:8 * H].set(whh1_t)

    # Fold the LayerNorm affine into the FC head.
    w_prime = gamma * fcw[0]                           # (H,)
    b_prime = jnp.dot(beta, fcw[0]) + fcb[0]           # scalar

    # Single lane-dense slab (88, 256); single rows sit at 8-aligned offsets.
    slab = jnp.zeros((2 * H + 24, 8 * H), jnp.float32)
    slab = slab.at[0:2 * H, :].set(w_fused)
    slab = slab.at[2 * H, 0:4 * H].set(wih0_t[0])
    slab = slab.at[2 * H, 4 * H:8 * H].set(b0)
    slab = slab.at[2 * H + 8, 0:4 * H].set(b1)
    slab = slab.at[2 * H + 8, 4 * H:5 * H].set(w_prime)
    slab = slab.at[2 * H + 16, :].set(b_prime)         # scalar broadcast across row
    return {"slab": slab}


@jax.jit
def stock_regression_forward(x, params):
    B, T = x.shape
    # Pad batch to a multiple of 8 so every (B,H)/(B,4H) intermediate fills the
    # vreg sublanes and stores are unmasked; slice the result back afterwards.
    B_pad = max(8, -(-B // 8) * 8)
    if B_pad != B:
        x = jnp.pad(x, ((0, B_pad - B), (0, 0)))
    # Time-major flatten so the kernel builds the whole layer-0 input-projection
    # slab with one broadcast-mul and reads it with sublane-aligned row slices.
    x_flat = x.T.reshape(T * B_pad, 1)

    vmem = pl.BlockSpec(memory_space=pltpu.MemorySpace.VMEM)
    out = pl.pallas_call(
        stock_regression_kernel,
        out_shape=jax.ShapeDtypeStruct((B_pad, 128), jnp.float32),
        in_specs=[vmem, vmem],
        out_specs=vmem,
    )(x_flat, params["slab"])
    return out[:B, 0:1]


if __name__ == "__main__":
    key = jax.random.PRNGKey(0)
    pkey, xkey = jax.random.split(key)
    params = init_params(pkey, HIDDEN_SIZE)
    # PyTorch forward receives (batch, seq); unsqueeze(-1) happens inside the model.
    x = jax.random.normal(xkey, (BATCH, SEQ), jnp.float32)

    out = stock_regression_forward(x, params)
    out = jax.block_until_ready(out)
    assert out.shape == (BATCH, 1) and out.dtype == jnp.float32
    print("KERNEL_OK")
</pallas_src>

<mosaic_0001>
module attributes {stable_mosaic.version = 11 : i64} {
  func.func @stock_regression_kernel(%arg0: memref<64x1xf32, #tpu.memory_space<vmem>>, %arg1: memref<88x256xf32, #tpu.memory_space<vmem>>, %arg2: memref<8x128xf32, #tpu.memory_space<vmem>>) attributes {dimension_semantics = [], scalar_prefetch = 0 : i64, scratch_operands = 0 : i64, tpu.core_type = #tpu.core_type<tc>} {
    %c0 = arith.constant 0 : index
    %c0_0 = arith.constant 0 : index
    %0 = vector.load %arg1[%c0, %c0_0] : memref<88x256xf32, #tpu.memory_space<vmem>>, vector<64x256xf32>
    %c64 = arith.constant 64 : index
    %c0_1 = arith.constant 0 : index
    %1 = vector.load %arg1[%c64, %c0_1] : memref<88x256xf32, #tpu.memory_space<vmem>>, vector<1x128xf32>
    %c64_2 = arith.constant 64 : index
    %c128 = arith.constant 128 : index
    %2 = vector.load %arg1[%c64_2, %c128] : memref<88x256xf32, #tpu.memory_space<vmem>>, vector<1x128xf32>
    %c72 = arith.constant 72 : index
    %c0_3 = arith.constant 0 : index
    %3 = vector.load %arg1[%c72, %c0_3] : memref<88x256xf32, #tpu.memory_space<vmem>>, vector<1x128xf32>
    %c72_4 = arith.constant 72 : index
    %c128_5 = arith.constant 128 : index
    %4 = vector.load %arg1[%c72_4, %c128_5] : memref<88x256xf32, #tpu.memory_space<vmem>>, vector<1x32xf32>
    %c80 = arith.constant 80 : index
    %c0_6 = arith.constant 0 : index
    %5 = vector.load %arg1[%c80, %c0_6] : memref<88x256xf32, #tpu.memory_space<vmem>>, vector<1x1xf32>
    %c0_7 = arith.constant 0 : index
    %c0_8 = arith.constant 0 : index
    %6 = vector.load %arg0[%c0_7, %c0_8] : memref<64x1xf32, #tpu.memory_space<vmem>>, vector<64x1xf32>
    %7 = vector.broadcast %6 : vector<64x1xf32> to vector<64x128xf32>
    %8 = vector.broadcast %1 : vector<1x128xf32> to vector<64x128xf32>
    %9 = arith.mulf %7, %8 : vector<64x128xf32>
    %10 = vector.broadcast %2 : vector<1x128xf32> to vector<64x128xf32>
    %11 = arith.addf %9, %10 : vector<64x128xf32>
    %cst = arith.constant 0.000000e+00 : f32
    %12 = vector.broadcast %cst : f32 to vector<8x32xf32>
    %cst_9 = arith.constant 0.000000e+00 : f32
    %13 = vector.broadcast %cst_9 : f32 to vector<8x32xf32>
    %cst_10 = arith.constant 0.000000e+00 : f32
    %14 = vector.broadcast %cst_10 : f32 to vector<8x32xf32>
    %15 = vector.extract_strided_slice %11 {offsets = [0, 0], sizes = [8, 128], strides = [1, 1]} : vector<64x128xf32> to vector<8x128xf32>
    %16 = arith.negf %15 : vector<8x128xf32>
    %17 = math.exp %16 : vector<8x128xf32>
    %cst_11 = arith.constant 1.000000e+00 : f32
    %18 = vector.broadcast %cst_11 : f32 to vector<8x128xf32>
    %19 = arith.addf %18, %17 : vector<8x128xf32>
    %20 = arith.divf %18, %19 : vector<8x128xf32>
    %21 = math.tanh %15 : vector<8x128xf32>
    %22 = vector.extract_strided_slice %20 {offsets = [0, 0], sizes = [8, 32], strides = [1, 1]} : vector<8x128xf32> to vector<8x32xf32>
    %23 = vector.extract_strided_slice %20 {offsets = [0, 32], sizes = [8, 32], strides = [1, 1]} : vector<8x128xf32> to vector<8x32xf32>
    %24 = vector.extract_strided_slice %20 {offsets = [0, 64], sizes = [8, 32], strides = [1, 1]} : vector<8x128xf32> to vector<8x32xf32>
    %25 = vector.extract_strided_slice %21 {offsets = [0, 96], sizes = [8, 32], strides = [1, 1]} : vector<8x128xf32> to vector<8x32xf32>
    %26 = arith.mulf %23, %12 : vector<8x32xf32>
    %27 = arith.mulf %22, %25 : vector<8x32xf32>
    %28 = arith.addf %26, %27 : vector<8x32xf32>
    %29 = math.tanh %28 : vector<8x32xf32>
    %30 = arith.mulf %24, %29 : vector<8x32xf32>
    %31 = tpu.concatenate %30, %13 in 1 : vector<8x32xf32>, vector<8x32xf32> -> vector<8x64xf32>
    %cst_12 = arith.constant dense<0.000000e+00> : vector<8x256xf32>
    %32 = tpu.matmul %31, %0, %cst_12 {dimension_numbers = #tpu.dot_dimension_numbers<[1], [0], [0], [1], [0, 0, 1, 1], [], []>} : vector<8x64xf32>, vector<64x256xf32>, vector<8x256xf32> -> vector<8x256xf32>
    %33 = vector.extract_strided_slice %32 {offsets = [0, 128], sizes = [8, 128], strides = [1, 1]} : vector<8x256xf32> to vector<8x128xf32>
    %34 = vector.broadcast %3 : vector<1x128xf32> to vector<8x128xf32>
    %35 = arith.addf %33, %34 : vector<8x128xf32>
    %36 = arith.negf %35 : vector<8x128xf32>
    %37 = math.exp %36 : vector<8x128xf32>
    %cst_13 = arith.constant 1.000000e+00 : f32
    %38 = vector.broadcast %cst_13 : f32 to vector<8x128xf32>
    %39 = arith.addf %38, %37 : vector<8x128xf32>
    %40 = arith.divf %38, %39 : vector<8x128xf32>
    %41 = math.tanh %35 : vector<8x128xf32>
    %42 = vector.extract_strided_slice %40 {offsets = [0, 0], sizes = [8, 32], strides = [1, 1]} : vector<8x128xf32> to vector<8x32xf32>
    %43 = vector.extract_strided_slice %40 {offsets = [0, 32], sizes = [8, 32], strides = [1, 1]} : vector<8x128xf32> to vector<8x32xf32>
    %44 = vector.extract_strided_slice %40 {offsets = [0, 64], sizes = [8, 32], strides = [1, 1]} : vector<8x128xf32> to vector<8x32xf32>
    %45 = vector.extract_strided_slice %41 {offsets = [0, 96], sizes = [8, 32], strides = [1, 1]} : vector<8x128xf32> to vector<8x32xf32>
    %46 = arith.mulf %43, %14 : vector<8x32xf32>
    %47 = arith.mulf %42, %45 : vector<8x32xf32>
    %48 = arith.addf %46, %47 : vector<8x32xf32>
    %49 = math.tanh %48 : vector<8x32xf32>
    %50 = arith.mulf %44, %49 : vector<8x32xf32>
    %51 = vector.extract_strided_slice %32 {offsets = [0, 0], sizes = [8, 128], strides = [1, 1]} : vector<8x256xf32> to vector<8x128xf32>
    %52 = vector.extract_strided_slice %11 {offsets = [8, 0], sizes = [8, 128], strides = [1, 1]} : vector<64x128xf32> to vector<8x128xf32>
    %53 = arith.addf %51, %52 : vector<8x128xf32>
    %54 = arith.negf %53 : vector<8x128xf32>
    %55 = math.exp %54 : vector<8x128xf32>
    %cst_14 = arith.constant 1.000000e+00 : f32
    %56 = vector.broadcast %cst_14 : f32 to vector<8x128xf32>
    %57 = arith.addf %56, %55 : vector<8x128xf32>
    %58 = arith.divf %56, %57 : vector<8x128xf32>
    %59 = math.tanh %53 : vector<8x128xf32>
    %60 = vector.extract_strided_slice %58 {offsets = [0, 0], sizes = [8, 32], strides = [1, 1]} : vector<8x128xf32> to vector<8x32xf32>
    %61 = vector.extract_strided_slice %58 {offsets = [0, 32], sizes = [8, 32], strides = [1, 1]} : vector<8x128xf32> to vector<8x32xf32>
    %62 = vector.extract_strided_slice %58 {offsets = [0, 64], sizes = [8, 32], strides = [1, 1]} : vector<8x128xf32> to vector<8x32xf32>
    %63 = vector.extract_strided_slice %59 {offsets = [0, 96], sizes = [8, 32], strides = [1, 1]} : vector<8x128xf32> to vector<8x32xf32>
    %64 = arith.mulf %61, %28 : vector<8x32xf32>
    %65 = arith.mulf %60, %63 : vector<8x32xf32>
    %66 = arith.addf %64, %65 : vector<8x32xf32>
    %67 = math.tanh %66 : vector<8x32xf32>
    %68 = arith.mulf %62, %67 : vector<8x32xf32>
    %69 = tpu.concatenate %68, %50 in 1 : vector<8x32xf32>, vector<8x32xf32> -> vector<8x64xf32>
    %cst_15 = arith.constant dense<0.000000e+00> : vector<8x256xf32>
    %70 = tpu.matmul %69, %0, %cst_15 {dimension_numbers = #tpu.dot_dimension_numbers<[1], [0], [0], [1], [0, 0, 1, 1], [], []>} : vector<8x64xf32>, vector<64x256xf32>, vector<8x256xf32> -> vector<8x256xf32>
    %71 = vector.extract_strided_slice %70 {offsets = [0, 128], sizes = [8, 128], strides = [1, 1]} : vector<8x256xf32> to vector<8x128xf32>
    %72 = vector.broadcast %3 : vector<1x128xf32> to vector<8x128xf32>
    %73 = arith.addf %71, %72 : vector<8x128xf32>
    %74 = arith.negf %73 : vector<8x128xf32>
    %75 = math.exp %74 : vector<8x128xf32>
    %cst_16 = arith.constant 1.000000e+00 : f32
    %76 = vector.broadcast %cst_16 : f32 to vector<8x128xf32>
    %77 = arith.addf %76, %75 : vector<8x128xf32>
    %78 = arith.divf %76, %77 : vector<8x128xf32>
    %79 = math.tanh %73 : vector<8x128xf32>
    %80 = vector.extract_strided_slice %78 {offsets = [0, 0], sizes = [8, 32], strides = [1, 1]} : vector<8x128xf32> to vector<8x32xf32>
    %81 = vector.extract_strided_slice %78 {offsets = [0, 32], sizes = [8, 32], strides = [1, 1]} : vector<8x128xf32> to vector<8x32xf32>
    %82 = vector.extract_strided_slice %78 {offsets = [0, 64], sizes = [8, 32], strides = [1, 1]} : vector<8x128xf32> to vector<8x32xf32>
    %83 = vector.extract_strided_slice %79 {offsets = [0, 96], sizes = [8, 32], strides = [1, 1]} : vector<8x128xf32> to vector<8x32xf32>
    %84 = arith.mulf %81, %48 : vector<8x32xf32>
    %85 = arith.mulf %80, %83 : vector<8x32xf32>
    %86 = arith.addf %84, %85 : vector<8x32xf32>
    %87 = math.tanh %86 : vector<8x32xf32>
    %88 = arith.mulf %82, %87 : vector<8x32xf32>
    %89 = vector.extract_strided_slice %70 {offsets = [0, 0], sizes = [8, 128], strides = [1, 1]} : vector<8x256xf32> to vector<8x128xf32>
    %90 = vector.extract_strided_slice %11 {offsets = [16, 0], sizes = [8, 128], strides = [1, 1]} : vector<64x128xf32> to vector<8x128xf32>
    %91 = arith.addf %89, %90 : vector<8x128xf32>
    %92 = arith.negf %91 : vector<8x128xf32>
    %93 = math.exp %92 : vector<8x128xf32>
    %cst_17 = arith.constant 1.000000e+00 : f32
    %94 = vector.broadcast %cst_17 : f32 to vector<8x128xf32>
    %95 = arith.addf %94, %93 : vector<8x128xf32>
    %96 = arith.divf %94, %95 : vector<8x128xf32>
    %97 = math.tanh %91 : vector<8x128xf32>
    %98 = vector.extract_strided_slice %96 {offsets = [0, 0], sizes = [8, 32], strides = [1, 1]} : vector<8x128xf32> to vector<8x32xf32>
    %99 = vector.extract_strided_slice %96 {offsets = [0, 32], sizes = [8, 32], strides = [1, 1]} : vector<8x128xf32> to vector<8x32xf32>
    %100 = vector.extract_strided_slice %96 {offsets = [0, 64], sizes = [8, 32], strides = [1, 1]} : vector<8x128xf32> to vector<8x32xf32>
    %101 = vector.extract_strided_slice %97 {offsets = [0, 96], sizes = [8, 32], strides = [1, 1]} : vector<8x128xf32> to vector<8x32xf32>
    %102 = arith.mulf %99, %66 : vector<8x32xf32>
    %103 = arith.mulf %98, %101 : vector<8x32xf32>
    %104 = arith.addf %102, %103 : vector<8x32xf32>
    %105 = math.tanh %104 : vector<8x32xf32>
    %106 = arith.mulf %100, %105 : vector<8x32xf32>
    %107 = tpu.concatenate %106, %88 in 1 : vector<8x32xf32>, vector<8x32xf32> -> vector<8x64xf32>
    %cst_18 = arith.constant dense<0.000000e+00> : vector<8x256xf32>
    %108 = tpu.matmul %107, %0, %cst_18 {dimension_numbers = #tpu.dot_dimension_numbers<[1], [0], [0], [1], [0, 0, 1, 1], [], []>} : vector<8x64xf32>, vector<64x256xf32>, vector<8x256xf32> -> vector<8x256xf32>
    %109 = vector.extract_strided_slice %108 {offsets = [0, 128], sizes = [8, 128], strides = [1, 1]} : vector<8x256xf32> to vector<8x128xf32>
    %110 = vector.broadcast %3 : vector<1x128xf32> to vector<8x128xf32>
    %111 = arith.addf %109, %110 : vector<8x128xf32>
    %112 = arith.negf %111 : vector<8x128xf32>
    %113 = math.exp %112 : vector<8x128xf32>
    %cst_19 = arith.constant 1.000000e+00 : f32
    %114 = vector.broadcast %cst_19 : f32 to vector<8x128xf32>
    %115 = arith.addf %114, %113 : vector<8x128xf32>
    %116 = arith.divf %114, %115 : vector<8x128xf32>
    %117 = math.tanh %111 : vector<8x128xf32>
    %118 = vector.extract_strided_slice %116 {offsets = [0, 0], sizes = [8, 32], strides = [1, 1]} : vector<8x128xf32> to vector<8x32xf32>
    %119 = vector.extract_strided_slice %116 {offsets = [0, 32], sizes = [8, 32], strides = [1, 1]} : vector<8x128xf32> to vector<8x32xf32>
    %120 = vector.extract_strided_slice %116 {offsets = [0, 64], sizes = [8, 32], strides = [1, 1]} : vector<8x128xf32> to vector<8x32xf32>
    %121 = vector.extract_strided_slice %117 {offsets = [0, 96], sizes = [8, 32], strides = [1, 1]} : vector<8x128xf32> to vector<8x32xf32>
    %122 = arith.mulf %119, %86 : vector<8x32xf32>
    %123 = arith.mulf %118, %121 : vector<8x32xf32>
    %124 = arith.addf %122, %123 : vector<8x32xf32>
    %125 = math.tanh %124 : vector<8x32xf32>
    %126 = arith.mulf %120, %125 : vector<8x32xf32>
    %127 = vector.extract_strided_slice %108 {offsets = [0, 0], sizes = [8, 128], strides = [1, 1]} : vector<8x256xf32> to vector<8x128xf32>
    %128 = vector.extract_strided_slice %11 {offsets = [24, 0], sizes = [8, 128], strides = [1, 1]} : vector<64x128xf32> to vector<8x128xf32>
    %129 = arith.addf %127, %128 : vector<8x128xf32>
    %130 = arith.negf %129 : vector<8x128xf32>
    %131 = math.exp %130 : vector<8x128xf32>
    %cst_20 = arith.constant 1.000000e+00 : f32
    %132 = vector.broadcast %cst_20 : f32 to vector<8x128xf32>
    %133 = arith.addf %132, %131 : vector<8x128xf32>
    %134 = arith.divf %132, %133 : vector<8x128xf32>
    %135 = math.tanh %129 : vector<8x128xf32>
    %136 = vector.extract_strided_slice %134 {offsets = [0, 0], sizes = [8, 32], strides = [1, 1]} : vector<8x128xf32> to vector<8x32xf32>
    %137 = vector.extract_strided_slice %134 {offsets = [0, 32], sizes = [8, 32], strides = [1, 1]} : vector<8x128xf32> to vector<8x32xf32>
    %138 = vector.extract_strided_slice %134 {offsets = [0, 64], sizes = [8, 32], strides = [1, 1]} : vector<8x128xf32> to vector<8x32xf32>
    %139 = vector.extract_strided_slice %135 {offsets = [0, 96], sizes = [8, 32], strides = [1, 1]} : vector<8x128xf32> to vector<8x32xf32>
    %140 = arith.mulf %137, %104 : vector<8x32xf32>
    %141 = arith.mulf %136, %139 : vector<8x32xf32>
    %142 = arith.addf %140, %141 : vector<8x32xf32>
    %143 = math.tanh %142 : vector<8x32xf32>
    %144 = arith.mulf %138, %143 : vector<8x32xf32>
    %145 = tpu.concatenate %144, %126 in 1 : vector<8x32xf32>, vector<8x32xf32> -> vector<8x64xf32>
    %cst_21 = arith.constant dense<0.000000e+00> : vector<8x256xf32>
    %146 = tpu.matmul %145, %0, %cst_21 {dimension_numbers = #tpu.dot_dimension_numbers<[1], [0], [0], [1], [0, 0, 1, 1], [], []>} : vector<8x64xf32>, vector<64x256xf32>, vector<8x256xf32> -> vector<8x256xf32>
    %147 = vector.extract_strided_slice %146 {offsets = [0, 128], sizes = [8, 128], strides = [1, 1]} : vector<8x256xf32> to vector<8x128xf32>
    %148 = vector.broadcast %3 : vector<1x128xf32> to vector<8x128xf32>
    %149 = arith.addf %147, %148 : vector<8x128xf32>
    %150 = arith.negf %149 : vector<8x128xf32>
    %151 = math.exp %150 : vector<8x128xf32>
    %cst_22 = arith.constant 1.000000e+00 : f32
    %152 = vector.broadcast %cst_22 : f32 to vector<8x128xf32>
    %153 = arith.addf %152, %151 : vector<8x128xf32>
    %154 = arith.divf %152, %153 : vector<8x128xf32>
    %155 = math.tanh %149 : vector<8x128xf32>
    %156 = vector.extract_strided_slice %154 {offsets = [0, 0], sizes = [8, 32], strides = [1, 1]} : vector<8x128xf32> to vector<8x32xf32>
    %157 = vector.extract_strided_slice %154 {offsets = [0, 32], sizes = [8, 32], strides = [1, 1]} : vector<8x128xf32> to vector<8x32xf32>
    %158 = vector.extract_strided_slice %154 {offsets = [0, 64], sizes = [8, 32], strides = [1, 1]} : vector<8x128xf32> to vector<8x32xf32>
    %159 = vector.extract_strided_slice %155 {offsets = [0, 96], sizes = [8, 32], strides = [1, 1]} : vector<8x128xf32> to vector<8x32xf32>
    %160 = arith.mulf %157, %124 : vector<8x32xf32>
    %161 = arith.mulf %156, %159 : vector<8x32xf32>
    %162 = arith.addf %160, %161 : vector<8x32xf32>
    %163 = math.tanh %162 : vector<8x32xf32>
    %164 = arith.mulf %158, %163 : vector<8x32xf32>
    %165 = vector.extract_strided_slice %146 {offsets = [0, 0], sizes = [8, 128], strides = [1, 1]} : vector<8x256xf32> to vector<8x128xf32>
    %166 = vector.extract_strided_slice %11 {offsets = [32, 0], sizes = [8, 128], strides = [1, 1]} : vector<64x128xf32> to vector<8x128xf32>
    %167 = arith.addf %165, %166 : vector<8x128xf32>
    %168 = arith.negf %167 : vector<8x128xf32>
    %169 = math.exp %168 : vector<8x128xf32>
    %cst_23 = arith.constant 1.000000e+00 : f32
    %170 = vector.broadcast %cst_23 : f32 to vector<8x128xf32>
    %171 = arith.addf %170, %169 : vector<8x128xf32>
    %172 = arith.divf %170, %171 : vector<8x128xf32>
    %173 = math.tanh %167 : vector<8x128xf32>
    %174 = vector.extract_strided_slice %172 {offsets = [0, 0], sizes = [8, 32], strides = [1, 1]} : vector<8x128xf32> to vector<8x32xf32>
    %175 = vector.extract_strided_slice %172 {offsets = [0, 32], sizes = [8, 32], strides = [1, 1]} : vector<8x128xf32> to vector<8x32xf32>
    %176 = vector.extract_strided_slice %172 {offsets = [0, 64], sizes = [8, 32], strides = [1, 1]} : vector<8x128xf32> to vector<8x32xf32>
    %177 = vector.extract_strided_slice %173 {offsets = [0, 96], sizes = [8, 32], strides = [1, 1]} : vector<8x128xf32> to vector<8x32xf32>
    %178 = arith.mulf %175, %142 : vector<8x32xf32>
    %179 = arith.mulf %174, %177 : vector<8x32xf32>
    %180 = arith.addf %178, %179 : vector<8x32xf32>
    %181 = math.tanh %180 : vector<8x32xf32>
    %182 = arith.mulf %176, %181 : vector<8x32xf32>
    %183 = tpu.concatenate %182, %164 in 1 : vector<8x32xf32>, vector<8x32xf32> -> vector<8x64xf32>
    %cst_24 = arith.constant dense<0.000000e+00> : vector<8x256xf32>
    %184 = tpu.matmul %183, %0, %cst_24 {dimension_numbers = #tpu.dot_dimension_numbers<[1], [0], [0], [1], [0, 0, 1, 1], [], []>} : vector<8x64xf32>, vector<64x256xf32>, vector<8x256xf32> -> vector<8x256xf32>
    %185 = vector.extract_strided_slice %184 {offsets = [0, 128], sizes = [8, 128], strides = [1, 1]} : vector<8x256xf32> to vector<8x128xf32>
    %186 = vector.broadcast %3 : vector<1x128xf32> to vector<8x128xf32>
    %187 = arith.addf %185, %186 : vector<8x128xf32>
    %188 = arith.negf %187 : vector<8x128xf32>
    %189 = math.exp %188 : vector<8x128xf32>
    %cst_25 = arith.constant 1.000000e+00 : f32
    %190 = vector.broadcast %cst_25 : f32 to vector<8x128xf32>
    %191 = arith.addf %190, %189 : vector<8x128xf32>
    %192 = arith.divf %190, %191 : vector<8x128xf32>
    %193 = math.tanh %187 : vector<8x128xf32>
    %194 = vector.extract_strided_slice %192 {offsets = [0, 0], sizes = [8, 32], strides = [1, 1]} : vector<8x128xf32> to vector<8x32xf32>
    %195 = vector.extract_strided_slice %192 {offsets = [0, 32], sizes = [8, 32], strides = [1, 1]} : vector<8x128xf32> to vector<8x32xf32>
    %196 = vector.extract_strided_slice %192 {offsets = [0, 64], sizes = [8, 32], strides = [1, 1]} : vector<8x128xf32> to vector<8x32xf32>
    %197 = vector.extract_strided_slice %193 {offsets = [0, 96], sizes = [8, 32], strides = [1, 1]} : vector<8x128xf32> to vector<8x32xf32>
    %198 = arith.mulf %195, %162 : vector<8x32xf32>
    %199 = arith.mulf %194, %197 : vector<8x32xf32>
    %200 = arith.addf %198, %199 : vector<8x32xf32>
    %201 = math.tanh %200 : vector<8x32xf32>
    %202 = arith.mulf %196, %201 : vector<8x32xf32>
    %203 = vector.extract_strided_slice %184 {offsets = [0, 0], sizes = [8, 128], strides = [1, 1]} : vector<8x256xf32> to vector<8x128xf32>
    %204 = vector.extract_strided_slice %11 {offsets = [40, 0], sizes = [8, 128], strides = [1, 1]} : vector<64x128xf32> to vector<8x128xf32>
    %205 = arith.addf %203, %204 : vector<8x128xf32>
    %206 = arith.negf %205 : vector<8x128xf32>
    %207 = math.exp %206 : vector<8x128xf32>
    %cst_26 = arith.constant 1.000000e+00 : f32
    %208 = vector.broadcast %cst_26 : f32 to vector<8x128xf32>
    %209 = arith.addf %208, %207 : vector<8x128xf32>
    %210 = arith.divf %208, %209 : vector<8x128xf32>
    %211 = math.tanh %205 : vector<8x128xf32>
    %212 = vector.extract_strided_slice %210 {offsets = [0, 0], sizes = [8, 32], strides = [1, 1]} : vector<8x128xf32> to vector<8x32xf32>
    %213 = vector.extract_strided_slice %210 {offsets = [0, 32], sizes = [8, 32], strides = [1, 1]} : vector<8x128xf32> to vector<8x32xf32>
    %214 = vector.extract_strided_slice %210 {offsets = [0, 64], sizes = [8, 32], strides = [1, 1]} : vector<8x128xf32> to vector<8x32xf32>
    %215 = vector.extract_strided_slice %211 {offsets = [0, 96], sizes = [8, 32], strides = [1, 1]} : vector<8x128xf32> to vector<8x32xf32>
    %216 = arith.mulf %213, %180 : vector<8x32xf32>
    %217 = arith.mulf %212, %215 : vector<8x32xf32>
    %218 = arith.addf %216, %217 : vector<8x32xf32>
    %219 = math.tanh %218 : vector<8x32xf32>
    %220 = arith.mulf %214, %219 : vector<8x32xf32>
    %221 = tpu.concatenate %220, %202 in 1 : vector<8x32xf32>, vector<8x32xf32> -> vector<8x64xf32>
    %cst_27 = arith.constant dense<0.000000e+00> : vector<8x256xf32>
    %222 = tpu.matmul %221, %0, %cst_27 {dimension_numbers = #tpu.dot_dimension_numbers<[1], [0], [0], [1], [0, 0, 1, 1], [], []>} : vector<8x64xf32>, vector<64x256xf32>, vector<8x256xf32> -> vector<8x256xf32>
    %223 = vector.extract_strided_slice %222 {offsets = [0, 128], sizes = [8, 128], strides = [1, 1]} : vector<8x256xf32> to vector<8x128xf32>
    %224 = vector.broadcast %3 : vector<1x128xf32> to vector<8x128xf32>
    %225 = arith.addf %223, %224 : vector<8x128xf32>
    %226 = arith.negf %225 : vector<8x128xf32>
    %227 = math.exp %226 : vector<8x128xf32>
    %cst_28 = arith.constant 1.000000e+00 : f32
    %228 = vector.broadcast %cst_28 : f32 to vector<8x128xf32>
    %229 = arith.addf %228, %227 : vector<8x128xf32>
    %230 = arith.divf %228, %229 : vector<8x128xf32>
    %231 = math.tanh %225 : vector<8x128xf32>
    %232 = vector.extract_strided_slice %230 {offsets = [0, 0], sizes = [8, 32], strides = [1, 1]} : vector<8x128xf32> to vector<8x32xf32>
    %233 = vector.extract_strided_slice %230 {offsets = [0, 32], sizes = [8, 32], strides = [1, 1]} : vector<8x128xf32> to vector<8x32xf32>
    %234 = vector.extract_strided_slice %230 {offsets = [0, 64], sizes = [8, 32], strides = [1, 1]} : vector<8x128xf32> to vector<8x32xf32>
    %235 = vector.extract_strided_slice %231 {offsets = [0, 96], sizes = [8, 32], strides = [1, 1]} : vector<8x128xf32> to vector<8x32xf32>
    %236 = arith.mulf %233, %200 : vector<8x32xf32>
    %237 = arith.mulf %232, %235 : vector<8x32xf32>
    %238 = arith.addf %236, %237 : vector<8x32xf32>
    %239 = math.tanh %238 : vector<8x32xf32>
    %240 = arith.mulf %234, %239 : vector<8x32xf32>
    %241 = vector.extract_strided_slice %222 {offsets = [0, 0], sizes = [8, 128], strides = [1, 1]} : vector<8x256xf32> to vector<8x128xf32>
    %242 = vector.extract_strided_slice %11 {offsets = [48, 0], sizes = [8, 128], strides = [1, 1]} : vector<64x128xf32> to vector<8x128xf32>
    %243 = arith.addf %241, %242 : vector<8x128xf32>
    %244 = arith.negf %243 : vector<8x128xf32>
    %245 = math.exp %244 : vector<8x128xf32>
    %cst_29 = arith.constant 1.000000e+00 : f32
    %246 = vector.broadcast %cst_29 : f32 to vector<8x128xf32>
    %247 = arith.addf %246, %245 : vector<8x128xf32>
    %248 = arith.divf %246, %247 : vector<8x128xf32>
    %249 = math.tanh %243 : vector<8x128xf32>
    %250 = vector.extract_strided_slice %248 {offsets = [0, 0], sizes = [8, 32], strides = [1, 1]} : vector<8x128xf32> to vector<8x32xf32>
    %251 = vector.extract_strided_slice %248 {offsets = [0, 32], sizes = [8, 32], strides = [1, 1]} : vector<8x128xf32> to vector<8x32xf32>
    %252 = vector.extract_strided_slice %248 {offsets = [0, 64], sizes = [8, 32], strides = [1, 1]} : vector<8x128xf32> to vector<8x32xf32>
    %253 = vector.extract_strided_slice %249 {offsets = [0, 96], sizes = [8, 32], strides = [1, 1]} : vector<8x128xf32> to vector<8x32xf32>
    %254 = arith.mulf %251, %218 : vector<8x32xf32>
    %255 = arith.mulf %250, %253 : vector<8x32xf32>
    %256 = arith.addf %254, %255 : vector<8x32xf32>
    %257 = math.tanh %256 : vector<8x32xf32>
    %258 = arith.mulf %252, %257 : vector<8x32xf32>
    %259 = tpu.concatenate %258, %240 in 1 : vector<8x32xf32>, vector<8x32xf32> -> vector<8x64xf32>
    %cst_30 = arith.constant dense<0.000000e+00> : vector<8x256xf32>
    %260 = tpu.matmul %259, %0, %cst_30 {dimension_numbers = #tpu.dot_dimension_numbers<[1], [0], [0], [1], [0, 0, 1, 1], [], []>} : vector<8x64xf32>, vector<64x256xf32>, vector<8x256xf32> -> vector<8x256xf32>
    %261 = vector.extract_strided_slice %260 {offsets = [0, 128], sizes = [8, 128], strides = [1, 1]} : vector<8x256xf32> to vector<8x128xf32>
    %262 = vector.broadcast %3 : vector<1x128xf32> to vector<8x128xf32>
    %263 = arith.addf %261, %262 : vector<8x128xf32>
    %264 = arith.negf %263 : vector<8x128xf32>
    %265 = math.exp %264 : vector<8x128xf32>
    %cst_31 = arith.constant 1.000000e+00 : f32
    %266 = vector.broadcast %cst_31 : f32 to vector<8x128xf32>
    %267 = arith.addf %266, %265 : vector<8x128xf32>
    %268 = arith.divf %266, %267 : vector<8x128xf32>
    %269 = math.tanh %263 : vector<8x128xf32>
    %270 = vector.extract_strided_slice %268 {offsets = [0, 0], sizes = [8, 32], strides = [1, 1]} : vector<8x128xf32> to vector<8x32xf32>
    %271 = vector.extract_strided_slice %268 {offsets = [0, 32], sizes = [8, 32], strides = [1, 1]} : vector<8x128xf32> to vector<8x32xf32>
    %272 = vector.extract_strided_slice %268 {offsets = [0, 64], sizes = [8, 32], strides = [1, 1]} : vector<8x128xf32> to vector<8x32xf32>
    %273 = vector.extract_strided_slice %269 {offsets = [0, 96], sizes = [8, 32], strides = [1, 1]} : vector<8x128xf32> to vector<8x32xf32>
    %274 = arith.mulf %271, %238 : vector<8x32xf32>
    %275 = arith.mulf %270, %273 : vector<8x32xf32>
    %276 = arith.addf %274, %275 : vector<8x32xf32>
    %277 = math.tanh %276 : vector<8x32xf32>
    %278 = arith.mulf %272, %277 : vector<8x32xf32>
    %279 = vector.extract_strided_slice %260 {offsets = [0, 0], sizes = [8, 128], strides = [1, 1]} : vector<8x256xf32> to vector<8x128xf32>
    %280 = vector.extract_strided_slice %11 {offsets = [56, 0], sizes = [8, 128], strides = [1, 1]} : vector<64x128xf32> to vector<8x128xf32>
    %281 = arith.addf %279, %280 : vector<8x128xf32>
    %282 = arith.negf %281 : vector<8x128xf32>
    %283 = math.exp %282 : vector<8x128xf32>
    %cst_32 = arith.constant 1.000000e+00 : f32
    %284 = vector.broadcast %cst_32 : f32 to vector<8x128xf32>
    %285 = arith.addf %284, %283 : vector<8x128xf32>
    %286 = arith.divf %284, %285 : vector<8x128xf32>
    %287 = math.tanh %281 : vector<8x128xf32>
    %288 = vector.extract_strided_slice %286 {offsets = [0, 0], sizes = [8, 32], strides = [1, 1]} : vector<8x128xf32> to vector<8x32xf32>
    %289 = vector.extract_strided_slice %286 {offsets = [0, 32], sizes = [8, 32], strides = [1, 1]} : vector<8x128xf32> to vector<8x32xf32>
    %290 = vector.extract_strided_slice %286 {offsets = [0, 64], sizes = [8, 32], strides = [1, 1]} : vector<8x128xf32> to vector<8x32xf32>
    %291 = vector.extract_strided_slice %287 {offsets = [0, 96], sizes = [8, 32], strides = [1, 1]} : vector<8x128xf32> to vector<8x32xf32>
    %292 = arith.mulf %289, %256 : vector<8x32xf32>
    %293 = arith.mulf %288, %291 : vector<8x32xf32>
    %294 = arith.addf %292, %293 : vector<8x32xf32>
    %295 = math.tanh %294 : vector<8x32xf32>
    %296 = arith.mulf %290, %295 : vector<8x32xf32>
    %297 = tpu.concatenate %296, %278 in 1 : vector<8x32xf32>, vector<8x32xf32> -> vector<8x64xf32>
    %cst_33 = arith.constant dense<0.000000e+00> : vector<8x256xf32>
    %298 = tpu.matmul %297, %0, %cst_33 {dimension_numbers = #tpu.dot_dimension_numbers<[1], [0], [0], [1], [0, 0, 1, 1], [], []>} : vector<8x64xf32>, vector<64x256xf32>, vector<8x256xf32> -> vector<8x256xf32>
    %299 = vector.extract_strided_slice %298 {offsets = [0, 128], sizes = [8, 128], strides = [1, 1]} : vector<8x256xf32> to vector<8x128xf32>
    %300 = vector.broadcast %3 : vector<1x128xf32> to vector<8x128xf32>
    %301 = arith.addf %299, %300 : vector<8x128xf32>
    %302 = arith.negf %301 : vector<8x128xf32>
    %303 = math.exp %302 : vector<8x128xf32>
    %cst_34 = arith.constant 1.000000e+00 : f32
    %304 = vector.broadcast %cst_34 : f32 to vector<8x128xf32>
    %305 = arith.addf %304, %303 : vector<8x128xf32>
    %306 = arith.divf %304, %305 : vector<8x128xf32>
    %307 = math.tanh %301 : vector<8x128xf32>
    %308 = vector.extract_strided_slice %306 {offsets = [0, 0], sizes = [8, 32], strides = [1, 1]} : vector<8x128xf32> to vector<8x32xf32>
    %309 = vector.extract_strided_slice %306 {offsets = [0, 32], sizes = [8, 32], strides = [1, 1]} : vector<8x128xf32> to vector<8x32xf32>
    %310 = vector.extract_strided_slice %306 {offsets = [0, 64], sizes = [8, 32], strides = [1, 1]} : vector<8x128xf32> to vector<8x32xf32>
    %311 = vector.extract_strided_slice %307 {offsets = [0, 96], sizes = [8, 32], strides = [1, 1]} : vector<8x128xf32> to vector<8x32xf32>
    %312 = arith.mulf %309, %276 : vector<8x32xf32>
    %313 = arith.mulf %308, %311 : vector<8x32xf32>
    %314 = arith.addf %312, %313 : vector<8x32xf32>
    %315 = math.tanh %314 : vector<8x32xf32>
    %316 = arith.mulf %310, %315 : vector<8x32xf32>
    %cst_35 = arith.constant dense<0.000000e+00> : vector<8xf32>
    %317 = vector.multi_reduction <add>, %316, %cst_35 [1] : vector<8x32xf32> to vector<8xf32>
    %318 = vector.shape_cast %317 : vector<8xf32> to vector<8x1xf32>
    %cst_36 = arith.constant 3.200000e+01 : f32
    %319 = vector.broadcast %cst_36 : f32 to vector<8x1xf32>
    %320 = arith.divf %318, %319 : vector<8x1xf32>
    %321 = vector.broadcast %320 : vector<8x1xf32> to vector<8x32xf32>
    %322 = arith.subf %316, %321 : vector<8x32xf32>
    %323 = arith.mulf %322, %322 : vector<8x32xf32>
    %cst_37 = arith.constant dense<0.000000e+00> : vector<8xf32>
    %324 = vector.multi_reduction <add>, %323, %cst_37 [1] : vector<8x32xf32> to vector<8xf32>
    %325 = vector.shape_cast %324 : vector<8xf32> to vector<8x1xf32>
    %cst_38 = arith.constant 3.200000e+01 : f32
    %326 = vector.broadcast %cst_38 : f32 to vector<8x1xf32>
    %327 = arith.divf %325, %326 : vector<8x1xf32>
    %cst_39 = arith.constant 9.99999974E-6 : f32
    %328 = vector.broadcast %cst_39 : f32 to vector<8x1xf32>
    %329 = arith.addf %327, %328 : vector<8x1xf32>
    %330 = math.rsqrt %329 : vector<8x1xf32>
    %331 = vector.broadcast %330 : vector<8x1xf32> to vector<8x32xf32>
    %332 = arith.mulf %322, %331 : vector<8x32xf32>
    %333 = vector.broadcast %4 : vector<1x32xf32> to vector<8x32xf32>
    %334 = arith.mulf %332, %333 : vector<8x32xf32>
    %cst_40 = arith.constant dense<0.000000e+00> : vector<8xf32>
    %335 = vector.multi_reduction <add>, %334, %cst_40 [1] : vector<8x32xf32> to vector<8xf32>
    %336 = vector.shape_cast %335 : vector<8xf32> to vector<8x1xf32>
    %337 = vector.broadcast %5 : vector<1x1xf32> to vector<8x1xf32>
    %338 = arith.addf %336, %337 : vector<8x1xf32>
    %339 = vector.shape_cast %338 : vector<8x1xf32> to vector<8x1xf32>
    %340 = vector.broadcast %339 : vector<8x1xf32> to vector<8x128xf32>
    %c0_41 = arith.constant 0 : index
    %c0_42 = arith.constant 0 : index
    %341 = vector.load %arg2[%c0_41, %c0_42] : memref<8x128xf32, #tpu.memory_space<vmem>>, vector<8x128xf32>
    tpu.vector_store %arg2[%c0_41, %c0_42], %340 {strides = array<i32>} : memref<8x128xf32, #tpu.memory_space<vmem>>, vector<8x128xf32>,
    return
  }
}

</mosaic_0001>

<llo_original>
// kernel: stock_regression_forward.1
$region0: #{stock_regression_forward.1}
  #allocation0 [shape = 'u32[]', space=smem, size = 0x4, offset = 0x4, fixed_abs, tag = 'smem constant byte address 0x4 - core index']
  #allocation1 [shape = 'u32[144,128]{1,0:T(1,128)}', space=vmem, size = 0x12000, scoped, tag = 'internal scratch']
  %s0 = inlined_call_operand.vmem [shape: f32[64,1], index: 0, kind: input, shape index: {}]
  %s1 = inlined_call_operand.hbm [shape: f32[88,256], index: 1, kind: input, shape index: {}]
  %s2 = inlined_call_operand.vmem [shape: f32[8,128], index: 2, kind: output, shape index: {}]
  %s3 = sld [smem:[#allocation0]]
  $region22: #{stock_regression_forward.1} parent=0
    _
  %s5 = ssub.s32 1, %s3
  %s6 = scalar_select 0, %s5, %s3
  $region1: #{stock_regression_forward.1} parent=0
    #allocation2 [shape = 'u8[90112]{0}', space=vmem, size = 0x16000, scoped, tag = 'input window, operand 1, single buffered']
    #allocation3 [shape = 's32[1]{0}', space=sflag, size = 0x4, scoped, tag = 'scoped memory for stock_regression_forward.1']
    %7 = vsyncpa [#allocation3], 0
    // Predicated region
    $region2: #{stock_regression_forward.1} parent=1 // pred_check
      _
    $region3: #{stock_regression_forward.1} parent=1 // pred_check_branch
      %9 = sbr.rel (0) target = $region5
    $region4: #{stock_regression_forward.1} parent=1 // pred_region
      _
    $region5: #{stock_regression_forward.1} parent=1 // pred_fallthru
      _
    // Predicated region
    $region6: #{stock_regression_forward.1} parent=1 // pred_check
      _
    $region7: #{stock_regression_forward.1} parent=1 // pred_check_branch
      %11 = sbr.rel (0) target = $region9
    $region8: #{stock_regression_forward.1} parent=1 // pred_region
      %s13 = ssub.s32 2816, 2816
      %14 = vsyncadd [#allocation3], %s13
      %s15 = sshll.u32 [#allocation2], 4
      %s16 = int_to_ptr.vmem [resolvable:$true] %s15
      %21 = dma.hbm_to_vmem [thread:$0]  %s1, 2816, %s16, [#allocation3], 256, 256, 16
    $region9: #{stock_regression_forward.1} parent=1 // pred_fallthru
      _
    // Predicated region
    $region10: #{stock_regression_forward.1} parent=1 // pred_check
      _
    $region11: #{stock_regression_forward.1} parent=1 // pred_check_branch
      %23 = sbr.rel (0) target = $region13
    $region12: #{stock_regression_forward.1} parent=1 // pred_region
      %24 = dma.done [#allocation3], 2816
    $region13: #{stock_regression_forward.1} parent=1 // pred_fallthru
      _
    %v25 = vld [vmem:[#allocation2] sm:$0xff]
    %v26 = vld [vmem:[#allocation2 + $0x8] sm:$0xff]
    %v27 = vld [vmem:[#allocation2 + $0x10] sm:$0xff]
    %v28 = vld [vmem:[#allocation2 + $0x18] sm:$0xff]
    %v29 = vld [vmem:[#allocation2 + $0x20] sm:$0xff]
    %v30 = vld [vmem:[#allocation2 + $0x28] sm:$0xff]
    %v31 = vld [vmem:[#allocation2 + $0x30] sm:$0xff]
    %v32 = vld [vmem:[#allocation2 + $0x38] sm:$0xff]
    %v33 = vld [vmem:[#allocation2 + $0x40] sm:$0xff]
    %v34 = vld [vmem:[#allocation2 + $0x48] sm:$0xff]
    %v35 = vld [vmem:[#allocation2 + $0x50] sm:$0xff]
    %v36 = vld [vmem:[#allocation2 + $0x58] sm:$0xff]
    %v37 = vld [vmem:[#allocation2 + $0x60] sm:$0xff]
    %v38 = vld [vmem:[#allocation2 + $0x68] sm:$0xff]
    %v39 = vld [vmem:[#allocation2 + $0x70] sm:$0xff]
    %v40 = vld [vmem:[#allocation2 + $0x78] sm:$0xff]
    %v41 = vld [vmem:[#allocation2 + $0x80] ss:$0 sm:$0xff]
    %v42 = vld [vmem:[#allocation2 + $0x88] ss:$0 sm:$0xff]
    %v43 = vld [vmem:[#allocation2 + $0x90] ss:$0 sm:$0xff]
    %v44 = vld [vmem:[#allocation2 + $0x98] ss:$0 sm:$0xff]
    %v45 = vld [vmem:[#allocation2 + $0xa0] ss:$0 sm:$0xff]
    %v46 = vld [vmem:[%s0] sm:$0xff]
    %v47 = vld [vmem:[%s0 + $0x8] sm:$0xff]
    %v48 = vld [vmem:[%s0 + $0x10] sm:$0xff]
    %v49 = vld [vmem:[%s0 + $0x18] sm:$0xff]
    %v50 = vld [vmem:[%s0 + $0x20] sm:$0xff]
    %v51 = vld [vmem:[%s0 + $0x28] sm:$0xff]
    %v52 = vld [vmem:[%s0 + $0x30] sm:$0xff]
    %v53 = vld [vmem:[%s0 + $0x38] sm:$0xff]
    %55 = vset.pattern.permute.xlu0 0
    %56 = vperm.xlu0 %55, %v46
    %v57 = vpop.permute.xlu0 %56
    %60 = vset.pattern.permute.xlu0 0
    %61 = vperm.xlu0 %60, %v47
    %v62 = vpop.permute.xlu0 %61
    %65 = vset.pattern.permute.xlu0 0
    %66 = vperm.xlu0 %65, %v48
    %v67 = vpop.permute.xlu0 %66
    %70 = vset.pattern.permute.xlu0 0
    %71 = vperm.xlu0 %70, %v49
    %v72 = vpop.permute.xlu0 %71
    %75 = vset.pattern.permute.xlu0 0
    %76 = vperm.xlu0 %75, %v50
    %v77 = vpop.permute.xlu0 %76
    %80 = vset.pattern.permute.xlu0 0
    %81 = vperm.xlu0 %80, %v51
    %v82 = vpop.permute.xlu0 %81
    %85 = vset.pattern.permute.xlu0 0
    %86 = vperm.xlu0 %85, %v52
    %v87 = vpop.permute.xlu0 %86
    %90 = vset.pattern.permute.xlu0 0
    %91 = vperm.xlu0 %90, %v53
    %v92 = vpop.permute.xlu0 %91
    %v94 = vmul.f32 %v57, %v41
    %v95 = vmul.f32 %v62, %v41
    %v96 = vmul.f32 %v67, %v41
    %v97 = vmul.f32 %v72, %v41
    %v98 = vmul.f32 %v77, %v41
    %v99 = vmul.f32 %v82, %v41
    %v100 = vmul.f32 %v87, %v41
    %v101 = vmul.f32 %v92, %v41
    %v102 = vadd.f32 %v94, %v42
    %v103 = vadd.f32 %v95, %v42
    %v104 = vadd.f32 %v96, %v42
    %v105 = vadd.f32 %v97, %v42
    %v106 = vadd.f32 %v98, %v42
    %v107 = vadd.f32 %v99, %v42
    %v108 = vadd.f32 %v100, %v42
    %v109 = vadd.f32 %v101, %v42
    %v110 = vxor.u32 %v102, 2147483648
    %v111 = vmul.f32 %v110, 1.442695
    %v112 = vpow.pop %v111
    %v113 = vadd.f32 %v112, 1.0
    %v114 = vrcp.pop %v113
    %v115 = vmul.f32 1.0, %v114
    %v116 = vtanh.pop %v102
    %v117 = vmul.f32 %v115, 0.0
    %119 = vrot.lane.b32.xlu0 %v116, 32
    %v120 = vpop.permute.xlu0 %119
    %v122 = vmul.f32 %v115, %v120
    %124 = vrot.lane.b32.xlu0 %v122, 32
    %v125 = vpop.permute.xlu0 %124
    %v127 = vadd.f32 %v117, %v125
    %v128 = vtanh.pop %v127
    %130 = vrot.lane.b32.xlu0 %v128, 32
    %v131 = vpop.permute.xlu0 %130
    %v133 = vmul.f32 %v115, %v131
    %135 = vrot.lane.b32.xlu0 %v133, 64
    %v136 = vpop.permute.xlu0 %135
    %vm138 = vcmask 261120
    %v139 = vsel %vm138, %v136, 0.0
    %vm140 = vcmask 523264
    %v142 = vsel %vm140, %v139, 0
    %144 = vmatprep.subr.mxu0 %v26
    %145 = vmatpush1.msra.mxu0 %v25
    %146 = vmatprep.subr.mxu0 %v28
    %147 = vmatpush1.msra.mxu0 %v27
    %148 = vmatprep.subr.mxu0 %v30
    %149 = vmatpush1.msra.mxu0 %v29
    %150 = vmatprep.subr.mxu0 %v32
    %151 = vmatpush1.msra.mxu0 %v31
    %152 = vmatprep.subr.mxu0 %v34
    %153 = vmatpush1.msra.mxu0 %v33
    %154 = vmatprep.subr.mxu0 %v36
    %155 = vmatpush1.msra.mxu0 %v35
    %156 = vmatprep.subr.mxu0 %v38
    %157 = vmatpush1.msra.mxu0 %v37
    %158 = vmatprep.subr.mxu0 %v40
    %159 = vmatpush1.msra.mxu0 %v39
    %160 = vmatprep.subr.mxu0 0.0
    %161 = vmatpush1.msra.mxu0 0.0
    %162 = vmatprep.subr.mxu0 0.0
    %163 = vmatpush1.msra.mxu0 0.0
    %164 = vmatprep.subr.mxu0 0.0
    %165 = vmatpush1.msra.mxu0 0.0
    %166 = vmatprep.subr.mxu0 0.0
    %167 = vmatpush1.msra.mxu0 0.0
    %168 = vmatprep.subr.mxu0 0.0
    %169 = vmatpush1.msra.mxu0 0.0
    %170 = vmatprep.subr.mxu0 0.0
    %171 = vmatpush1.msra.mxu0 0.0
    %172 = vmatprep.subr.mxu0 0.0
    %173 = vmatpush1.msra.mxu0 0.0
    %174 = vmatprep.subr.mxu0 0.0
    %175 = vmatpush1.msra.mxu0 0.0
    %176 = vmatprep.subr.mxu0 0.0
    %177 = vmatpush1.msra.mxu0 0.0
    %178 = vmatprep.subr.mxu0 0.0
    %179 = vmatpush1.msra.mxu0 0.0
    %180 = vmatprep.subr.mxu0 0.0
    %181 = vmatpush1.msra.mxu0 0.0
    %182 = vmatprep.subr.mxu0 0.0
    %183 = vmatpush1.msra.mxu0 0.0
    %184 = vmatprep.subr.mxu0 0.0
    %185 = vmatpush1.msra.mxu0 0.0
    %186 = vmatprep.subr.mxu0 0.0
    %187 = vmatpush1.msra.mxu0 0.0
    %188 = vmatprep.subr.mxu0 0.0
    %189 = vmatpush1.msra.mxu0 0.0
    %190 = vmatprep.subr.mxu0 0.0
    %191 = vmatpush1.msra.mxu0 0.0
    %192 = vmatprep.subr.mxu0 0.0
    %193 = vmatpush1.msra.mxu0 0.0
    %194 = vmatprep.subr.mxu0 0.0
    %195 = vmatpush1.msra.mxu0 0.0
    %196 = vmatprep.subr.mxu0 0.0
    %197 = vmatpush1.msra.mxu0 0.0
    %198 = vmatprep.subr.mxu0 0.0
    %199 = vmatpush1.msra.mxu0 0.0
    %200 = vmatprep.subr.mxu0 0.0
    %201 = vmatpush1.msra.mxu0 0.0
    %202 = vmatprep.subr.mxu0 0.0
    %203 = vmatpush1.msra.mxu0 0.0
    %204 = vmatprep.subr.mxu0 0.0
    %205 = vmatpush1.msra.mxu0 0.0
    %206 = vmatprep.subr.mxu0 0.0
    %207 = vmatpush1.msra.mxu0 0.0
    %208 = vmatprep.mubr.f32.mxu0 0.0
    %209 = vmatmul.mubr.f32.gmra.mrb[0].mxu0 %v142
    %v210 = vpop.f32.mrb[0].mxu0
    %v211 = vadd.f32 0.0, %v210
    %v212 = vpop.f32.mrb[0].mxu0
    %v213 = vadd.f32 0.0, %v212
    %214 = vdwg.mxu0
    %v215 = vadd.f32 %v213, %v43
    %v216 = vxor.u32 %v215, 2147483648
    %v217 = vmul.f32 %v216, 1.442695
    %v218 = vpow.pop %v217
    %v219 = vadd.f32 %v218, 1.0
    %v220 = vrcp.pop %v219
    %v221 = vmul.f32 1.0, %v220
    %v222 = vtanh.pop %v215
    %v223 = vmul.f32 %v221, 0.0
    %225 = vrot.lane.b32.xlu0 %v222, 32
    %v226 = vpop.permute.xlu0 %225
    %v228 = vmul.f32 %v221, %v226
    %230 = vrot.lane.b32.xlu0 %v228, 32
    %v231 = vpop.permute.xlu0 %230
    %v233 = vadd.f32 %v223, %v231
    %v234 = vtanh.pop %v233
    %236 = vrot.lane.b32.xlu0 %v234, 32
    %v237 = vpop.permute.xlu0 %236
    %v239 = vmul.f32 %v221, %v237
    %v240 = vadd.f32 %v211, %v103
    %v241 = vxor.u32 %v240, 2147483648
    %v242 = vmul.f32 %v241, 1.442695
    %v243 = vpow.pop %v242
    %v244 = vadd.f32 %v243, 1.0
    %v245 = vrcp.pop %v244
    %v246 = vmul.f32 1.0, %v245
    %v247 = vtanh.pop %v240
    %v248 = vmul.f32 %v246, %v127
    %250 = vrot.lane.b32.xlu0 %v247, 32
    %v251 = vpop.permute.xlu0 %250
    %v253 = vmul.f32 %v246, %v251
    %255 = vrot.lane.b32.xlu0 %v253, 32
    %v256 = vpop.permute.xlu0 %255
    %v258 = vadd.f32 %v248, %v256
    %v259 = vtanh.pop %v258
    %261 = vrot.lane.b32.xlu0 %v259, 32
    %v262 = vpop.permute.xlu0 %261
    %v264 = vmul.f32 %v246, %v262
    %266 = vrot.lane.b32.xlu0 %v264, 64
    %v267 = vpop.permute.xlu0 %266
    %270 = vrot.lane.b32.xlu0 %v239, 96
    %v271 = vpop.permute.xlu0 %270
    %v273 = vsel %vm138, %v267, %v271
    %v275 = vsel %vm140, %v273, 0
    %277 = vmatprep.subr.mxu0 %v26
    %278 = vmatpush1.msra.mxu0 %v25
    %279 = vmatprep.subr.mxu0 %v28
    %280 = vmatpush1.msra.mxu0 %v27
    %281 = vmatprep.subr.mxu0 %v30
    %282 = vmatpush1.msra.mxu0 %v29
    %283 = vmatprep.subr.mxu0 %v32
    %284 = vmatpush1.msra.mxu0 %v31
    %285 = vmatprep.subr.mxu0 %v34
    %286 = vmatpush1.msra.mxu0 %v33
    %287 = vmatprep.subr.mxu0 %v36
    %288 = vmatpush1.msra.mxu0 %v35
    %289 = vmatprep.subr.mxu0 %v38
    %290 = vmatpush1.msra.mxu0 %v37
    %291 = vmatprep.subr.mxu0 %v40
    %292 = vmatpush1.msra.mxu0 %v39
    %293 = vmatprep.subr.mxu0 0.0
    %294 = vmatpush1.msra.mxu0 0.0
    %295 = vmatprep.subr.mxu0 0.0
    %296 = vmatpush1.msra.mxu0 0.0
    %297 = vmatprep.subr.mxu0 0.0
    %298 = vmatpush1.msra.mxu0 0.0
    %299 = vmatprep.subr.mxu0 0.0
    %300 = vmatpush1.msra.mxu0 0.0
    %301 = vmatprep.subr.mxu0 0.0
    %302 = vmatpush1.msra.mxu0 0.0
    %303 = vmatprep.subr.mxu0 0.0
    %304 = vmatpush1.msra.mxu0 0.0
    %305 = vmatprep.subr.mxu0 0.0
    %306 = vmatpush1.msra.mxu0 0.0
    %307 = vmatprep.subr.mxu0 0.0
    %308 = vmatpush1.msra.mxu0 0.0
    %309 = vmatprep.subr.mxu0 0.0
    %310 = vmatpush1.msra.mxu0 0.0
    %311 = vmatprep.subr.mxu0 0.0
    %312 = vmatpush1.msra.mxu0 0.0
    %313 = vmatprep.subr.mxu0 0.0
    %314 = vmatpush1.msra.mxu0 0.0
    %315 = vmatprep.subr.mxu0 0.0
    %316 = vmatpush1.msra.mxu0 0.0
    %317 = vmatprep.subr.mxu0 0.0
    %318 = vmatpush1.msra.mxu0 0.0
    %319 = vmatprep.subr.mxu0 0.0
    %320 = vmatpush1.msra.mxu0 0.0
    %321 = vmatprep.subr.mxu0 0.0
    %322 = vmatpush1.msra.mxu0 0.0
    %323 = vmatprep.subr.mxu0 0.0
    %324 = vmatpush1.msra.mxu0 0.0
    %325 = vmatprep.subr.mxu0 0.0
    %326 = vmatpush1.msra.mxu0 0.0
    %327 = vmatprep.subr.mxu0 0.0
    %328 = vmatpush1.msra.mxu0 0.0
    %329 = vmatprep.subr.mxu0 0.0
    %330 = vmatpush1.msra.mxu0 0.0
    %331 = vmatprep.subr.mxu0 0.0
    %332 = vmatpush1.msra.mxu0 0.0
    %333 = vmatprep.subr.mxu0 0.0
    %334 = vmatpush1.msra.mxu0 0.0
    %335 = vmatprep.subr.mxu0 0.0
    %336 = vmatpush1.msra.mxu0 0.0
    %337 = vmatprep.subr.mxu0 0.0
    %338 = vmatpush1.msra.mxu0 0.0
    %339 = vmatprep.subr.mxu0 0.0
    %340 = vmatpush1.msra.mxu0 0.0
    %341 = vmatprep.mubr.f32.mxu0 0.0
    %342 = vmatmul.mubr.f32.gmra.mrb[0].mxu0 %v275
    %v343 = vpop.f32.mrb[0].mxu0
    %v344 = vadd.f32 0.0, %v343
    %v345 = vpop.f32.mrb[0].mxu0
    %v346 = vadd.f32 0.0, %v345
    %347 = vdwg.mxu0
    %v348 = vadd.f32 %v346, %v43
    %v349 = vxor.u32 %v348, 2147483648
    %v350 = vmul.f32 %v349, 1.442695
    %v351 = vpow.pop %v350
    %v352 = vadd.f32 %v351, 1.0
    %v353 = vrcp.pop %v352
    %v354 = vmul.f32 1.0, %v353
    %v355 = vtanh.pop %v348
    %v356 = vmul.f32 %v354, %v233
    %358 = vrot.lane.b32.xlu0 %v355, 32
    %v359 = vpop.permute.xlu0 %358
    %v361 = vmul.f32 %v354, %v359
    %363 = vrot.lane.b32.xlu0 %v361, 32
    %v364 = vpop.permute.xlu0 %363
    %v366 = vadd.f32 %v356, %v364
    %v367 = vtanh.pop %v366
    %369 = vrot.lane.b32.xlu0 %v367, 32
    %v370 = vpop.permute.xlu0 %369
    %v372 = vmul.f32 %v354, %v370
    %v373 = vadd.f32 %v344, %v104
    %v374 = vxor.u32 %v373, 2147483648
    %v375 = vmul.f32 %v374, 1.442695
    %v376 = vpow.pop %v375
    %v377 = vadd.f32 %v376, 1.0
    %v378 = vrcp.pop %v377
    %v379 = vmul.f32 1.0, %v378
    %v380 = vtanh.pop %v373
    %v381 = vmul.f32 %v379, %v258
    %383 = vrot.lane.b32.xlu0 %v380, 32
    %v384 = vpop.permute.xlu0 %383
    %v386 = vmul.f32 %v379, %v384
    %388 = vrot.lane.b32.xlu0 %v386, 32
    %v389 = vpop.permute.xlu0 %388
    %v391 = vadd.f32 %v381, %v389
    %v392 = vtanh.pop %v391
    %394 = vrot.lane.b32.xlu0 %v392, 32
    %v395 = vpop.permute.xlu0 %394
    %v397 = vmul.f32 %v379, %v395
    %399 = vrot.lane.b32.xlu0 %v397, 64
    %v400 = vpop.permute.xlu0 %399
    %403 = vrot.lane.b32.xlu0 %v372, 96
    %v404 = vpop.permute.xlu0 %403
    %v406 = vsel %vm138, %v400, %v404
    %v408 = vsel %vm140, %v406, 0
    %410 = vmatprep.subr.mxu0 %v26
    %411 = vmatpush1.msra.mxu0 %v25
    %412 = vmatprep.subr.mxu0 %v28
    %413 = vmatpush1.msra.mxu0 %v27
    %414 = vmatprep.subr.mxu0 %v30
    %415 = vmatpush1.msra.mxu0 %v29
    %416 = vmatprep.subr.mxu0 %v32
    %417 = vmatpush1.msra.mxu0 %v31
    %418 = vmatprep.subr.mxu0 %v34
    %419 = vmatpush1.msra.mxu0 %v33
    %420 = vmatprep.subr.mxu0 %v36
    %421 = vmatpush1.msra.mxu0 %v35
    %422 = vmatprep.subr.mxu0 %v38
    %423 = vmatpush1.msra.mxu0 %v37
    %424 = vmatprep.subr.mxu0 %v40
    %425 = vmatpush1.msra.mxu0 %v39
    %426 = vmatprep.subr.mxu0 0.0
    %427 = vmatpush1.msra.mxu0 0.0
    %428 = vmatprep.subr.mxu0 0.0
    %429 = vmatpush1.msra.mxu0 0.0
    %430 = vmatprep.subr.mxu0 0.0
    %431 = vmatpush1.msra.mxu0 0.0
    %432 = vmatprep.subr.mxu0 0.0
    %433 = vmatpush1.msra.mxu0 0.0
    %434 = vmatprep.subr.mxu0 0.0
    %435 = vmatpush1.msra.mxu0 0.0
    %436 = vmatprep.subr.mxu0 0.0
    %437 = vmatpush1.msra.mxu0 0.0
    %438 = vmatprep.subr.mxu0 0.0
    %439 = vmatpush1.msra.mxu0 0.0
    %440 = vmatprep.subr.mxu0 0.0
    %441 = vmatpush1.msra.mxu0 0.0
    %442 = vmatprep.subr.mxu0 0.0
    %443 = vmatpush1.msra.mxu0 0.0
    %444 = vmatprep.subr.mxu0 0.0
    %445 = vmatpush1.msra.mxu0 0.0
    %446 = vmatprep.subr.mxu0 0.0
    %447 = vmatpush1.msra.mxu0 0.0
    %448 = vmatprep.subr.mxu0 0.0
    %449 = vmatpush1.msra.mxu0 0.0
    %450 = vmatprep.subr.mxu0 0.0
    %451 = vmatpush1.msra.mxu0 0.0
    %452 = vmatprep.subr.mxu0 0.0
    %453 = vmatpush1.msra.mxu0 0.0
    %454 = vmatprep.subr.mxu0 0.0
    %455 = vmatpush1.msra.mxu0 0.0
    %456 = vmatprep.subr.mxu0 0.0
    %457 = vmatpush1.msra.mxu0 0.0
    %458 = vmatprep.subr.mxu0 0.0
    %459 = vmatpush1.msra.mxu0 0.0
    %460 = vmatprep.subr.mxu0 0.0
    %461 = vmatpush1.msra.mxu0 0.0
    %462 = vmatprep.subr.mxu0 0.0
    %463 = vmatpush1.msra.mxu0 0.0
    %464 = vmatprep.subr.mxu0 0.0
    %465 = vmatpush1.msra.mxu0 0.0
    %466 = vmatprep.subr.mxu0 0.0
    %467 = vmatpush1.msra.mxu0 0.0
    %468 = vmatprep.subr.mxu0 0.0
    %469 = vmatpush1.msra.mxu0 0.0
    %470 = vmatprep.subr.mxu0 0.0
    %471 = vmatpush1.msra.mxu0 0.0
    %472 = vmatprep.subr.mxu0 0.0
    %473 = vmatpush1.msra.mxu0 0.0
    %474 = vmatprep.mubr.f32.mxu0 0.0
    %475 = vmatmul.mubr.f32.gmra.mrb[0].mxu0 %v408
    %v476 = vpop.f32.mrb[0].mxu0
    %v477 = vadd.f32 0.0, %v476
    %v478 = vpop.f32.mrb[0].mxu0
    %v479 = vadd.f32 0.0, %v478
    %480 = vdwg.mxu0
    %v481 = vadd.f32 %v479, %v43
    %v482 = vxor.u32 %v481, 2147483648
    %v483 = vmul.f32 %v482, 1.442695
    %v484 = vpow.pop %v483
    %v485 = vadd.f32 %v484, 1.0
    %v486 = vrcp.pop %v485
    %v487 = vmul.f32 1.0, %v486
    %v488 = vtanh.pop %v481
    %v489 = vmul.f32 %v487, %v366
    %491 = vrot.lane.b32.xlu0 %v488, 32
    %v492 = vpop.permute.xlu0 %491
    %v494 = vmul.f32 %v487, %v492
    %496 = vrot.lane.b32.xlu0 %v494, 32
    %v497 = vpop.permute.xlu0 %496
    %v499 = vadd.f32 %v489, %v497
    %v500 = vtanh.pop %v499
    %502 = vrot.lane.b32.xlu0 %v500, 32
    %v503 = vpop.permute.xlu0 %502
    %v505 = vmul.f32 %v487, %v503
    %v506 = vadd.f32 %v477, %v105
    %v507 = vxor.u32 %v506, 2147483648
    %v508 = vmul.f32 %v507, 1.442695
    %v509 = vpow.pop %v508
    %v510 = vadd.f32 %v509, 1.0
    %v511 = vrcp.pop %v510
    %v512 = vmul.f32 1.0, %v511
    %v513 = vtanh.pop %v506
    %v514 = vmul.f32 %v512, %v391
    %516 = vrot.lane.b32.xlu0 %v513, 32
    %v517 = vpop.permute.xlu0 %516
    %v519 = vmul.f32 %v512, %v517
    %521 = vrot.lane.b32.xlu0 %v519, 32
    %v522 = vpop.permute.xlu0 %521
    %v524 = vadd.f32 %v514, %v522
    %v525 = vtanh.pop %v524
    %527 = vrot.lane.b32.xlu0 %v525, 32
    %v528 = vpop.permute.xlu0 %527
    %v530 = vmul.f32 %v512, %v528
    %532 = vrot.lane.b32.xlu0 %v530, 64
    %v533 = vpop.permute.xlu0 %532
    %536 = vrot.lane.b32.xlu0 %v505, 96
    %v537 = vpop.permute.xlu0 %536
    %v539 = vsel %vm138, %v533, %v537
    %v541 = vsel %vm140, %v539, 0
    %543 = vmatprep.subr.mxu0 %v26
    %544 = vmatpush1.msra.mxu0 %v25
    %545 = vmatprep.subr.mxu0 %v28
    %546 = vmatpush1.msra.mxu0 %v27
    %547 = vmatprep.subr.mxu0 %v30
    %548 = vmatpush1.msra.mxu0 %v29
    %549 = vmatprep.subr.mxu0 %v32
    %550 = vmatpush1.msra.mxu0 %v31
    %551 = vmatprep.subr.mxu0 %v34
    %552 = vmatpush1.msra.mxu0 %v33
    %553 = vmatprep.subr.mxu0 %v36
    %554 = vmatpush1.msra.mxu0 %v35
    %555 = vmatprep.subr.mxu0 %v38
    %556 = vmatpush1.msra.mxu0 %v37
    %557 = vmatprep.subr.mxu0 %v40
    %558 = vmatpush1.msra.mxu0 %v39
    %559 = vmatprep.subr.mxu0 0.0
    %560 = vmatpush1.msra.mxu0 0.0
    %561 = vmatprep.subr.mxu0 0.0
    %562 = vmatpush1.msra.mxu0 0.0
    %563 = vmatprep.subr.mxu0 0.0
    %564 = vmatpush1.msra.mxu0 0.0
    %565 = vmatprep.subr.mxu0 0.0
    %566 = vmatpush1.msra.mxu0 0.0
    %567 = vmatprep.subr.mxu0 0.0
    %568 = vmatpush1.msra.mxu0 0.0
    %569 = vmatprep.subr.mxu0 0.0
    %570 = vmatpush1.msra.mxu0 0.0
    %571 = vmatprep.subr.mxu0 0.0
    %572 = vmatpush1.msra.mxu0 0.0
    %573 = vmatprep.subr.mxu0 0.0
    %574 = vmatpush1.msra.mxu0 0.0
    %575 = vmatprep.subr.mxu0 0.0
    %576 = vmatpush1.msra.mxu0 0.0
    %577 = vmatprep.subr.mxu0 0.0
    %578 = vmatpush1.msra.mxu0 0.0
    %579 = vmatprep.subr.mxu0 0.0
    %580 = vmatpush1.msra.mxu0 0.0
    %581 = vmatprep.subr.mxu0 0.0
    %582 = vmatpush1.msra.mxu0 0.0
    %583 = vmatprep.subr.mxu0 0.0
    %584 = vmatpush1.msra.mxu0 0.0
    %585 = vmatprep.subr.mxu0 0.0
    %586 = vmatpush1.msra.mxu0 0.0
    %587 = vmatprep.subr.mxu0 0.0
    %588 = vmatpush1.msra.mxu0 0.0
    %589 = vmatprep.subr.mxu0 0.0
    %590 = vmatpush1.msra.mxu0 0.0
    %591 = vmatprep.subr.mxu0 0.0
    %592 = vmatpush1.msra.mxu0 0.0
    %593 = vmatprep.subr.mxu0 0.0
    %594 = vmatpush1.msra.mxu0 0.0
    %595 = vmatprep.subr.mxu0 0.0
    %596 = vmatpush1.msra.mxu0 0.0
    %597 = vmatprep.subr.mxu0 0.0
    %598 = vmatpush1.msra.mxu0 0.0
    %599 = vmatprep.subr.mxu0 0.0
    %600 = vmatpush1.msra.mxu0 0.0
    %601 = vmatprep.subr.mxu0 0.0
    %602 = vmatpush1.msra.mxu0 0.0
    %603 = vmatprep.subr.mxu0 0.0
    %604 = vmatpush1.msra.mxu0 0.0
    %605 = vmatprep.subr.mxu0 0.0
    %606 = vmatpush1.msra.mxu0 0.0
    %607 = vmatprep.mubr.f32.mxu0 0.0
    %608 = vmatmul.mubr.f32.gmra.mrb[0].mxu0 %v541
    %v609 = vpop.f32.mrb[0].mxu0
    %v610 = vadd.f32 0.0, %v609
    %v611 = vpop.f32.mrb[0].mxu0
    %v612 = vadd.f32 0.0, %v611
    %613 = vdwg.mxu0
    %v614 = vadd.f32 %v612, %v43
    %v615 = vxor.u32 %v614, 2147483648
    %v616 = vmul.f32 %v615, 1.442695
    %v617 = vpow.pop %v616
    %v618 = vadd.f32 %v617, 1.0
    %v619 = vrcp.pop %v618
    %v620 = vmul.f32 1.0, %v619
    %v621 = vtanh.pop %v614
    %v622 = vmul.f32 %v620, %v499
    %624 = vrot.lane.b32.xlu0 %v621, 32
    %v625 = vpop.permute.xlu0 %624
    %v627 = vmul.f32 %v620, %v625
    %629 = vrot.lane.b32.xlu0 %v627, 32
    %v630 = vpop.permute.xlu0 %629
    %v632 = vadd.f32 %v622, %v630
    %v633 = vtanh.pop %v632
    %635 = vrot.lane.b32.xlu0 %v633, 32
    %v636 = vpop.permute.xlu0 %635
    %v638 = vmul.f32 %v620, %v636
    %v639 = vadd.f32 %v610, %v106
    %v640 = vxor.u32 %v639, 2147483648
    %v641 = vmul.f32 %v640, 1.442695
    %v642 = vpow.pop %v641
    %v643 = vadd.f32 %v642, 1.0
    %v644 = vrcp.pop %v643
    %v645 = vmul.f32 1.0, %v644
    %v646 = vtanh.pop %v639
    %v647 = vmul.f32 %v645, %v524
    %649 = vrot.lane.b32.xlu0 %v646, 32
    %v650 = vpop.permute.xlu0 %649
    %v652 = vmul.f32 %v645, %v650
    %654 = vrot.lane.b32.xlu0 %v652, 32
    %v655 = vpop.permute.xlu0 %654
    %v657 = vadd.f32 %v647, %v655
    %v658 = vtanh.pop %v657
    %660 = vrot.lane.b32.xlu0 %v658, 32
    %v661 = vpop.permute.xlu0 %660
    %v663 = vmul.f32 %v645, %v661
    %665 = vrot.lane.b32.xlu0 %v663, 64
    %v666 = vpop.permute.xlu0 %665
    %669 = vrot.lane.b32.xlu0 %v638, 96
    %v670 = vpop.permute.xlu0 %669
    %v672 = vsel %vm138, %v666, %v670
    %v674 = vsel %vm140, %v672, 0
    %676 = vmatprep.subr.mxu0 %v26
    %677 = vmatpush1.msra.mxu0 %v25
    %678 = vmatprep.subr.mxu0 %v28
    %679 = vmatpush1.msra.mxu0 %v27
    %680 = vmatprep.subr.mxu0 %v30
    %681 = vmatpush1.msra.mxu0 %v29
    %682 = vmatprep.subr.mxu0 %v32
    %683 = vmatpush1.msra.mxu0 %v31
    %684 = vmatprep.subr.mxu0 %v34
    %685 = vmatpush1.msra.mxu0 %v33
    %686 = vmatprep.subr.mxu0 %v36
    %687 = vmatpush1.msra.mxu0 %v35
    %688 = vmatprep.subr.mxu0 %v38
    %689 = vmatpush1.msra.mxu0 %v37
    %690 = vmatprep.subr.mxu0 %v40
    %691 = vmatpush1.msra.mxu0 %v39
    %692 = vmatprep.subr.mxu0 0.0
    %693 = vmatpush1.msra.mxu0 0.0
    %694 = vmatprep.subr.mxu0 0.0
    %695 = vmatpush1.msra.mxu0 0.0
    %696 = vmatprep.subr.mxu0 0.0
    %697 = vmatpush1.msra.mxu0 0.0
    %698 = vmatprep.subr.mxu0 0.0
    %699 = vmatpush1.msra.mxu0 0.0
    %700 = vmatprep.subr.mxu0 0.0
    %701 = vmatpush1.msra.mxu0 0.0
    %702 = vmatprep.subr.mxu0 0.0
    %703 = vmatpush1.msra.mxu0 0.0
    %704 = vmatprep.subr.mxu0 0.0
    %705 = vmatpush1.msra.mxu0 0.0
    %706 = vmatprep.subr.mxu0 0.0
    %707 = vmatpush1.msra.mxu0 0.0
    %708 = vmatprep.subr.mxu0 0.0
    %709 = vmatpush1.msra.mxu0 0.0
    %710 = vmatprep.subr.mxu0 0.0
    %711 = vmatpush1.msra.mxu0 0.0
    %712 = vmatprep.subr.mxu0 0.0
    %713 = vmatpush1.msra.mxu0 0.0
    %714 = vmatprep.subr.mxu0 0.0
    %715 = vmatpush1.msra.mxu0 0.0
    %716 = vmatprep.subr.mxu0 0.0
    %717 = vmatpush1.msra.mxu0 0.0
    %718 = vmatprep.subr.mxu0 0.0
    %719 = vmatpush1.msra.mxu0 0.0
    %720 = vmatprep.subr.mxu0 0.0
    %721 = vmatpush1.msra.mxu0 0.0
    %722 = vmatprep.subr.mxu0 0.0
    %723 = vmatpush1.msra.mxu0 0.0
    %724 = vmatprep.subr.mxu0 0.0
    %725 = vmatpush1.msra.mxu0 0.0
    %726 = vmatprep.subr.mxu0 0.0
    %727 = vmatpush1.msra.mxu0 0.0
    %728 = vmatprep.subr.mxu0 0.0
    %729 = vmatpush1.msra.mxu0 0.0
    %730 = vmatprep.subr.mxu0 0.0
    %731 = vmatpush1.msra.mxu0 0.0
    %732 = vmatprep.subr.mxu0 0.0
    %733 = vmatpush1.msra.mxu0 0.0
    %734 = vmatprep.subr.mxu0 0.0
    %735 = vmatpush1.msra.mxu0 0.0
    %736 = vmatprep.subr.mxu0 0.0
    %737 = vmatpush1.msra.mxu0 0.0
    %738 = vmatprep.subr.mxu0 0.0
    %739 = vmatpush1.msra.mxu0 0.0
    %740 = vmatprep.mubr.f32.mxu0 0.0
    %741 = vmatmul.mubr.f32.gmra.mrb[0].mxu0 %v674
    %v742 = vpop.f32.mrb[0].mxu0
    %v743 = vadd.f32 0.0, %v742
    %v744 = vpop.f32.mrb[0].mxu0
    %v745 = vadd.f32 0.0, %v744
    %746 = vdwg.mxu0
    %v747 = vadd.f32 %v745, %v43
    %v748 = vxor.u32 %v747, 2147483648
    %v749 = vmul.f32 %v748, 1.442695
    %v750 = vpow.pop %v749
    %v751 = vadd.f32 %v750, 1.0
    %v752 = vrcp.pop %v751
    %v753 = vmul.f32 1.0, %v752
    %v754 = vtanh.pop %v747
    %v755 = vmul.f32 %v753, %v632
    %757 = vrot.lane.b32.xlu0 %v754, 32
    %v758 = vpop.permute.xlu0 %757
    %v760 = vmul.f32 %v753, %v758
    %762 = vrot.lane.b32.xlu0 %v760, 32
    %v763 = vpop.permute.xlu0 %762
    %v765 = vadd.f32 %v755, %v763
    %v766 = vtanh.pop %v765
    %768 = vrot.lane.b32.xlu0 %v766, 32
    %v769 = vpop.permute.xlu0 %768
    %v771 = vmul.f32 %v753, %v769
    %v772 = vadd.f32 %v743, %v107
    %v773 = vxor.u32 %v772, 2147483648
    %v774 = vmul.f32 %v773, 1.442695
    %v775 = vpow.pop %v774
    %v776 = vadd.f32 %v775, 1.0
    %v777 = vrcp.pop %v776
    %v778 = vmul.f32 1.0, %v777
    %v779 = vtanh.pop %v772
    %v780 = vmul.f32 %v778, %v657
    %782 = vrot.lane.b32.xlu0 %v779, 32
    %v783 = vpop.permute.xlu0 %782
    %v785 = vmul.f32 %v778, %v783
    %787 = vrot.lane.b32.xlu0 %v785, 32
    %v788 = vpop.permute.xlu0 %787
    %v790 = vadd.f32 %v780, %v788
    %v791 = vtanh.pop %v790
    %793 = vrot.lane.b32.xlu0 %v791, 32
    %v794 = vpop.permute.xlu0 %793
    %v796 = vmul.f32 %v778, %v794
    %798 = vrot.lane.b32.xlu0 %v796, 64
    %v799 = vpop.permute.xlu0 %798
    %802 = vrot.lane.b32.xlu0 %v771, 96
    %v803 = vpop.permute.xlu0 %802
    %v805 = vsel %vm138, %v799, %v803
    %v807 = vsel %vm140, %v805, 0
    %809 = vmatprep.subr.mxu0 %v26
    %810 = vmatpush1.msra.mxu0 %v25
    %811 = vmatprep.subr.mxu0 %v28
    %812 = vmatpush1.msra.mxu0 %v27
    %813 = vmatprep.subr.mxu0 %v30
    %814 = vmatpush1.msra.mxu0 %v29
    %815 = vmatprep.subr.mxu0 %v32
    %816 = vmatpush1.msra.mxu0 %v31
    %817 = vmatprep.subr.mxu0 %v34
    %818 = vmatpush1.msra.mxu0 %v33
    %819 = vmatprep.subr.mxu0 %v36
    %820 = vmatpush1.msra.mxu0 %v35
    %821 = vmatprep.subr.mxu0 %v38
    %822 = vmatpush1.msra.mxu0 %v37
    %823 = vmatprep.subr.mxu0 %v40
    %824 = vmatpush1.msra.mxu0 %v39
    %825 = vmatprep.subr.mxu0 0.0
    %826 = vmatpush1.msra.mxu0 0.0
    %827 = vmatprep.subr.mxu0 0.0
    %828 = vmatpush1.msra.mxu0 0.0
    %829 = vmatprep.subr.mxu0 0.0
    %830 = vmatpush1.msra.mxu0 0.0
    %831 = vmatprep.subr.mxu0 0.0
    %832 = vmatpush1.msra.mxu0 0.0
    %833 = vmatprep.subr.mxu0 0.0
    %834 = vmatpush1.msra.mxu0 0.0
    %835 = vmatprep.subr.mxu0 0.0
    %836 = vmatpush1.msra.mxu0 0.0
    %837 = vmatprep.subr.mxu0 0.0
    %838 = vmatpush1.msra.mxu0 0.0
    %839 = vmatprep.subr.mxu0 0.0
    %840 = vmatpush1.msra.mxu0 0.0
    %841 = vmatprep.subr.mxu0 0.0
    %842 = vmatpush1.msra.mxu0 0.0
    %843 = vmatprep.subr.mxu0 0.0
    %844 = vmatpush1.msra.mxu0 0.0
    %845 = vmatprep.subr.mxu0 0.0
    %846 = vmatpush1.msra.mxu0 0.0
    %847 = vmatprep.subr.mxu0 0.0
    %848 = vmatpush1.msra.mxu0 0.0
    %849 = vmatprep.subr.mxu0 0.0
    %850 = vmatpush1.msra.mxu0 0.0
    %851 = vmatprep.subr.mxu0 0.0
    %852 = vmatpush1.msra.mxu0 0.0
    %853 = vmatprep.subr.mxu0 0.0
    %854 = vmatpush1.msra.mxu0 0.0
    %855 = vmatprep.subr.mxu0 0.0
    %856 = vmatpush1.msra.mxu0 0.0
    %857 = vmatprep.subr.mxu0 0.0
    %858 = vmatpush1.msra.mxu0 0.0
    %859 = vmatprep.subr.mxu0 0.0
    %860 = vmatpush1.msra.mxu0 0.0
    %861 = vmatprep.subr.mxu0 0.0
    %862 = vmatpush1.msra.mxu0 0.0
    %863 = vmatprep.subr.mxu0 0.0
    %864 = vmatpush1.msra.mxu0 0.0
    %865 = vmatprep.subr.mxu0 0.0
    %866 = vmatpush1.msra.mxu0 0.0
    %867 = vmatprep.subr.mxu0 0.0
    %868 = vmatpush1.msra.mxu0 0.0
    %869 = vmatprep.subr.mxu0 0.0
    %870 = vmatpush1.msra.mxu0 0.0
    %871 = vmatprep.subr.mxu0 0.0
    %872 = vmatpush1.msra.mxu0 0.0
    %873 = vmatprep.mubr.f32.mxu0 0.0
    %874 = vmatmul.mubr.f32.gmra.mrb[0].mxu0 %v807
    %v875 = vpop.f32.mrb[0].mxu0
    %v876 = vadd.f32 0.0, %v875
    %v877 = vpop.f32.mrb[0].mxu0
    %v878 = vadd.f32 0.0, %v877
    %879 = vdwg.mxu0
    %v880 = vadd.f32 %v878, %v43
    %v881 = vxor.u32 %v880, 2147483648
    %v882 = vmul.f32 %v881, 1.442695
    %v883 = vpow.pop %v882
    %v884 = vadd.f32 %v883, 1.0
    %v885 = vrcp.pop %v884
    %v886 = vmul.f32 1.0, %v885
    %v887 = vtanh.pop %v880
    %v888 = vmul.f32 %v886, %v765
    %890 = vrot.lane.b32.xlu0 %v887, 32
    %v891 = vpop.permute.xlu0 %890
    %v893 = vmul.f32 %v886, %v891
    %895 = vrot.lane.b32.xlu0 %v893, 32
    %v896 = vpop.permute.xlu0 %895
    %v898 = vadd.f32 %v888, %v896
    %v899 = vtanh.pop %v898
    %901 = vrot.lane.b32.xlu0 %v899, 32
    %v902 = vpop.permute.xlu0 %901
    %v904 = vmul.f32 %v886, %v902
    %v905 = vadd.f32 %v876, %v108
    %v906 = vxor.u32 %v905, 2147483648
    %v907 = vmul.f32 %v906, 1.442695
    %v908 = vpow.pop %v907
    %v909 = vadd.f32 %v908, 1.0
    %v910 = vrcp.pop %v909
    %v911 = vmul.f32 1.0, %v910
    %v912 = vtanh.pop %v905
    %v913 = vmul.f32 %v911, %v790
    %915 = vrot.lane.b32.xlu0 %v912, 32
    %v916 = vpop.permute.xlu0 %915
    %v918 = vmul.f32 %v911, %v916
    %920 = vrot.lane.b32.xlu0 %v918, 32
    %v921 = vpop.permute.xlu0 %920
    %v923 = vadd.f32 %v913, %v921
    %v924 = vtanh.pop %v923
    %926 = vrot.lane.b32.xlu0 %v924, 32
    %v927 = vpop.permute.xlu0 %926
    %v929 = vmul.f32 %v911, %v927
    %931 = vrot.lane.b32.xlu0 %v929, 64
    %v932 = vpop.permute.xlu0 %931
    %935 = vrot.lane.b32.xlu0 %v904, 96
    %v936 = vpop.permute.xlu0 %935
    %v938 = vsel %vm138, %v932, %v936
    %v940 = vsel %vm140, %v938, 0
    %942 = vmatprep.subr.mxu0 %v26
    %943 = vmatpush1.msra.mxu0 %v25
    %944 = vmatprep.subr.mxu0 %v28
    %945 = vmatpush1.msra.mxu0 %v27
    %946 = vmatprep.subr.mxu0 %v30
    %947 = vmatpush1.msra.mxu0 %v29
    %948 = vmatprep.subr.mxu0 %v32
    %949 = vmatpush1.msra.mxu0 %v31
    %950 = vmatprep.subr.mxu0 %v34
    %951 = vmatpush1.msra.mxu0 %v33
    %952 = vmatprep.subr.mxu0 %v36
    %953 = vmatpush1.msra.mxu0 %v35
    %954 = vmatprep.subr.mxu0 %v38
    %955 = vmatpush1.msra.mxu0 %v37
    %956 = vmatprep.subr.mxu0 %v40
    %957 = vmatpush1.msra.mxu0 %v39
    %958 = vmatprep.subr.mxu0 0.0
    %959 = vmatpush1.msra.mxu0 0.0
    %960 = vmatprep.subr.mxu0 0.0
    %961 = vmatpush1.msra.mxu0 0.0
    %962 = vmatprep.subr.mxu0 0.0
    %963 = vmatpush1.msra.mxu0 0.0
    %964 = vmatprep.subr.mxu0 0.0
    %965 = vmatpush1.msra.mxu0 0.0
    %966 = vmatprep.subr.mxu0 0.0
    %967 = vmatpush1.msra.mxu0 0.0
    %968 = vmatprep.subr.mxu0 0.0
    %969 = vmatpush1.msra.mxu0 0.0
    %970 = vmatprep.subr.mxu0 0.0
    %971 = vmatpush1.msra.mxu0 0.0
    %972 = vmatprep.subr.mxu0 0.0
    %973 = vmatpush1.msra.mxu0 0.0
    %974 = vmatprep.subr.mxu0 0.0
    %975 = vmatpush1.msra.mxu0 0.0
    %976 = vmatprep.subr.mxu0 0.0
    %977 = vmatpush1.msra.mxu0 0.0
    %978 = vmatprep.subr.mxu0 0.0
    %979 = vmatpush1.msra.mxu0 0.0
    %980 = vmatprep.subr.mxu0 0.0
    %981 = vmatpush1.msra.mxu0 0.0
    %982 = vmatprep.subr.mxu0 0.0
    %983 = vmatpush1.msra.mxu0 0.0
    %984 = vmatprep.subr.mxu0 0.0
    %985 = vmatpush1.msra.mxu0 0.0
    %986 = vmatprep.subr.mxu0 0.0
    %987 = vmatpush1.msra.mxu0 0.0
    %988 = vmatprep.subr.mxu0 0.0
    %989 = vmatpush1.msra.mxu0 0.0
    %990 = vmatprep.subr.mxu0 0.0
    %991 = vmatpush1.msra.mxu0 0.0
    %992 = vmatprep.subr.mxu0 0.0
    %993 = vmatpush1.msra.mxu0 0.0
    %994 = vmatprep.subr.mxu0 0.0
    %995 = vmatpush1.msra.mxu0 0.0
    %996 = vmatprep.subr.mxu0 0.0
    %997 = vmatpush1.msra.mxu0 0.0
    %998 = vmatprep.subr.mxu0 0.0
    %999 = vmatpush1.msra.mxu0 0.0
    %1000 = vmatprep.subr.mxu0 0.0
    %1001 = vmatpush1.msra.mxu0 0.0
    %1002 = vmatprep.subr.mxu0 0.0
    %1003 = vmatpush1.msra.mxu0 0.0
    %1004 = vmatprep.subr.mxu0 0.0
    %1005 = vmatpush1.msra.mxu0 0.0
    %1006 = vmatprep.mubr.f32.mxu0 0.0
    %1007 = vmatmul.mubr.f32.gmra.mrb[0].mxu0 %v940
    %v1008 = vpop.f32.mrb[0].mxu0
    %v1009 = vadd.f32 0.0, %v1008
    %v1010 = vpop.f32.mrb[0].mxu0
    %v1011 = vadd.f32 0.0, %v1010
    %1012 = vdwg.mxu0
    %v1013 = vadd.f32 %v1011, %v43
    %v1014 = vxor.u32 %v1013, 2147483648
    %v1015 = vmul.f32 %v1014, 1.442695
    %v1016 = vpow.pop %v1015
    %v1017 = vadd.f32 %v1016, 1.0
    %v1018 = vrcp.pop %v1017
    %v1019 = vmul.f32 1.0, %v1018
    %v1020 = vtanh.pop %v1013
    %v1021 = vmul.f32 %v1019, %v898
    %1023 = vrot.lane.b32.xlu0 %v1020, 32
    %v1024 = vpop.permute.xlu0 %1023
    %v1026 = vmul.f32 %v1019, %v1024
    %1028 = vrot.lane.b32.xlu0 %v1026, 32
    %v1029 = vpop.permute.xlu0 %1028
    %v1031 = vadd.f32 %v1021, %v1029
    %v1032 = vtanh.pop %v1031
    %1034 = vrot.lane.b32.xlu0 %v1032, 32
    %v1035 = vpop.permute.xlu0 %1034
    %v1037 = vmul.f32 %v1019, %v1035
    %v1038 = vadd.f32 %v1009, %v109
    %v1039 = vxor.u32 %v1038, 2147483648
    %v1040 = vmul.f32 %v1039, 1.442695
    %v1041 = vpow.pop %v1040
    %v1042 = vadd.f32 %v1041, 1.0
    %v1043 = vrcp.pop %v1042
    %v1044 = vmul.f32 1.0, %v1043
    %v1045 = vtanh.pop %v1038
    %v1046 = vmul.f32 %v1044, %v923
    %1048 = vrot.lane.b32.xlu0 %v1045, 32
    %v1049 = vpop.permute.xlu0 %1048
    %v1051 = vmul.f32 %v1044, %v1049
    %1053 = vrot.lane.b32.xlu0 %v1051, 32
    %v1054 = vpop.permute.xlu0 %1053
    %v1056 = vadd.f32 %v1046, %v1054
    %v1057 = vtanh.pop %v1056
    %1059 = vrot.lane.b32.xlu0 %v1057, 32
    %v1060 = vpop.permute.xlu0 %1059
    %v1062 = vmul.f32 %v1044, %v1060
    %1064 = vrot.lane.b32.xlu0 %v1062, 64
    %v1065 = vpop.permute.xlu0 %1064
    %1068 = vrot.lane.b32.xlu0 %v1037, 96
    %v1069 = vpop.permute.xlu0 %1068
    %v1071 = vsel %vm138, %v1065, %v1069
    %v1073 = vsel %vm140, %v1071, 0
    %1075 = vmatprep.subr.mxu0 %v26
    %1076 = vmatpush1.msra.mxu0 %v25
    %1077 = vmatprep.subr.mxu0 %v28
    %1078 = vmatpush1.msra.mxu0 %v27
    %1079 = vmatprep.subr.mxu0 %v30
    %1080 = vmatpush1.msra.mxu0 %v29
    %1081 = vmatprep.subr.mxu0 %v32
    %1082 = vmatpush1.msra.mxu0 %v31
    %1083 = vmatprep.subr.mxu0 %v34
    %1084 = vmatpush1.msra.mxu0 %v33
    %1085 = vmatprep.subr.mxu0 %v36
    %1086 = vmatpush1.msra.mxu0 %v35
    %1087 = vmatprep.subr.mxu0 %v38
    %1088 = vmatpush1.msra.mxu0 %v37
    %1089 = vmatprep.subr.mxu0 %v40
    %1090 = vmatpush1.msra.mxu0 %v39
    %1091 = vmatprep.subr.mxu0 0.0
    %1092 = vmatpush1.msra.mxu0 0.0
    %1093 = vmatprep.subr.mxu0 0.0
    %1094 = vmatpush1.msra.mxu0 0.0
    %1095 = vmatprep.subr.mxu0 0.0
    %1096 = vmatpush1.msra.mxu0 0.0
    %1097 = vmatprep.subr.mxu0 0.0
    %1098 = vmatpush1.msra.mxu0 0.0
    %1099 = vmatprep.subr.mxu0 0.0
    %1100 = vmatpush1.msra.mxu0 0.0
    %1101 = vmatprep.subr.mxu0 0.0
    %1102 = vmatpush1.msra.mxu0 0.0
    %1103 = vmatprep.subr.mxu0 0.0
    %1104 = vmatpush1.msra.mxu0 0.0
    %1105 = vmatprep.subr.mxu0 0.0
    %1106 = vmatpush1.msra.mxu0 0.0
    %1107 = vmatprep.subr.mxu0 0.0
    %1108 = vmatpush1.msra.mxu0 0.0
    %1109 = vmatprep.subr.mxu0 0.0
    %1110 = vmatpush1.msra.mxu0 0.0
    %1111 = vmatprep.subr.mxu0 0.0
    %1112 = vmatpush1.msra.mxu0 0.0
    %1113 = vmatprep.subr.mxu0 0.0
    %1114 = vmatpush1.msra.mxu0 0.0
    %1115 = vmatprep.subr.mxu0 0.0
    %1116 = vmatpush1.msra.mxu0 0.0
    %1117 = vmatprep.subr.mxu0 0.0
    %1118 = vmatpush1.msra.mxu0 0.0
    %1119 = vmatprep.subr.mxu0 0.0
    %1120 = vmatpush1.msra.mxu0 0.0
    %1121 = vmatprep.subr.mxu0 0.0
    %1122 = vmatpush1.msra.mxu0 0.0
    %1123 = vmatprep.subr.mxu0 0.0
    %1124 = vmatpush1.msra.mxu0 0.0
    %1125 = vmatprep.subr.mxu0 0.0
    %1126 = vmatpush1.msra.mxu0 0.0
    %1127 = vmatprep.subr.mxu0 0.0
    %1128 = vmatpush1.msra.mxu0 0.0
    %1129 = vmatprep.subr.mxu0 0.0
    %1130 = vmatpush1.msra.mxu0 0.0
    %1131 = vmatprep.subr.mxu0 0.0
    %1132 = vmatpush1.msra.mxu0 0.0
    %1133 = vmatprep.subr.mxu0 0.0
    %1134 = vmatpush1.msra.mxu0 0.0
    %1135 = vmatprep.subr.mxu0 0.0
    %1136 = vmatpush1.msra.mxu0 0.0
    %1137 = vmatprep.subr.mxu0 0.0
    %1138 = vmatpush1.msra.mxu0 0.0
    %1139 = vmatprep.mubr.f32.mxu0 0.0
    %1140 = vmatmul.mubr.f32.gmra.mrb[0].mxu0 %v1073
    %v1141 = vpop.f32.mrb[0].mxu0
    %v1142 = vpop.f32.mrb[0].mxu0
    %v1143 = vadd.f32 0.0, %v1142
    %1144 = vdwg.mxu0
    %v1145 = vadd.f32 %v1143, %v43
    %v1146 = vxor.u32 %v1145, 2147483648
    %v1147 = vmul.f32 %v1146, 1.442695
    %v1148 = vpow.pop %v1147
    %v1149 = vadd.f32 %v1148, 1.0
    %v1150 = vrcp.pop %v1149
    %v1151 = vmul.f32 1.0, %v1150
    %v1152 = vtanh.pop %v1145
    %v1153 = vmul.f32 %v1151, %v1031
    %1155 = vrot.lane.b32.xlu0 %v1152, 32
    %v1156 = vpop.permute.xlu0 %1155
    %v1158 = vmul.f32 %v1151, %v1156
    %1160 = vrot.lane.b32.xlu0 %v1158, 32
    %v1161 = vpop.permute.xlu0 %1160
    %v1163 = vadd.f32 %v1153, %v1161
    %v1164 = vtanh.pop %v1163
    %1166 = vrot.lane.b32.xlu0 %v1164, 32
    %v1167 = vpop.permute.xlu0 %1166
    %v1169 = vmul.f32 %v1151, %v1167
    %1171 = vrot.lane.b32.xlu0 %v1169, 64
    %v1172 = vpop.permute.xlu0 %1171
    %v1174 = vsel %vm138, %v1172, 0.0
    %1175 = vadd.xlane.f32.xlu0 %v1174
    %v1176 = vpop.xlane.xlu0 %1175
    %v1177 = vrcp.pop 32.0
    %v1178 = vmul.f32 %v1176, %v1177
    %v1179 = vsub.f32 %v1169, %v1178
    %v1180 = vmul.f32 %v1179, %v1179
    %1182 = vrot.lane.b32.xlu0 %v1180, 64
    %v1183 = vpop.permute.xlu0 %1182
    %v1185 = vsel %vm138, %v1183, 0.0
    %1186 = vadd.xlane.f32.xlu0 %v1185
    %v1187 = vpop.xlane.xlu0 %1186
    %v1188 = vmul.f32 %v1187, %v1177
    %v1189 = vadd.f32 %v1188, 1e-05
    %v1190 = vrsqrt.pop %v1189
    %v1191 = vmul.f32 %v1179, %v1190
    %1193 = vrot.lane.b32.xlu0 %v44, 64
    %v1194 = vpop.permute.xlu0 %1193
    %v1196 = vmul.f32 %v1191, %v1194
    %1198 = vrot.lane.b32.xlu0 %v1196, 64
    %v1199 = vpop.permute.xlu0 %1198
    %v1201 = vsel %vm138, %v1199, 0.0
    %1202 = vadd.xlane.f32.xlu0 %v1201
    %v1203 = vpop.xlane.xlu0 %1202
    %v1204 = vadd.f32 %v1203, %v45
    %1206 = vset.pattern.permute.xlu0 0
    %1207 = vperm.xlu0 %1206, %v1204
    %v1208 = vpop.permute.xlu0 %1207
    %1210 = vst [vmem:[%s2] sm:$0xff] %v1208
    // Predicated region
    $region14: #{stock_regression_forward.1} parent=1 // pred_check
      _
    $region15: #{stock_regression_forward.1} parent=1 // pred_check_branch
      %1212 = sbr.rel (0) target = $region17
    $region16: #{stock_regression_forward.1} parent=1 // pred_region
      _
    $region17: #{stock_regression_forward.1} parent=1 // pred_fallthru
      _
    // Predicated region
    $region18: #{stock_regression_forward.1} parent=1 // pred_check
      _
    $region19: #{stock_regression_forward.1} parent=1 // pred_check_branch
      %1214 = sbr.rel (0) target = $region21
    $region20: #{stock_regression_forward.1} parent=1 // pred_region
      _
    $region21: #{stock_regression_forward.1} parent=1 // pred_fallthru
      _
    %1215 = vsyncpa [#allocation3], 1

</llo_original>
